<compile_context>
chip_gen: v7x
topology: tpu7x:2x2x1
jax: 0.10.0
libtpu: 0.0.40
codegen_flags: <defaults>
</compile_context>

<pallas_src>
import jax
import jax.numpy as jnp
from jax.experimental import pallas as pl
from jax.experimental.pallas import tpu as pltpu

# ----------------------------- config ---------------------------------------
BATCH = 2
SEQ = 8
HIDDEN = 32
NUM_HEADS = 2
HEAD_DIM = HIDDEN // NUM_HEADS
FFN = 64
NUM_LAYERS = 2
VOCAB = 50
TYPE_VOCAB = 2
MAX_POS = 16
NUM_LABELS = 4
PAD_LABELS = 128          # lane-dense padded classifier width
LN_EPS = 1e-12

# ------------------ packed small-vector slab row layout ----------------------
# One (NUM_VEC_ROWS, 128) f32 slab holds every tiny 1-D parameter.
VEC_ROW_EMB_LN_G = 0
VEC_ROW_EMB_LN_B = 1
VEC_ROW_LAYER0 = 2
VEC_ROWS_PER_LAYER = 8    # [ln1_g, ln1_b, ln2_g, ln2_b, bqkv, bo, b1, b2]
VEC_LN1_G, VEC_LN1_B, VEC_LN2_G, VEC_LN2_B, VEC_BQKV, VEC_BO, VEC_B1, VEC_B2 = range(8)
VEC_ROW_BC = VEC_ROW_LAYER0 + VEC_ROWS_PER_LAYER * NUM_LAYERS
NUM_VEC_ROWS = VEC_ROW_BC + 1


# --------------------------- kernel helpers ----------------------------------
def _layernorm(x, gamma, beta):
    mu = jnp.mean(x, axis=-1, keepdims=True)
    var = jnp.mean((x - mu) ** 2, axis=-1, keepdims=True)
    return (x - mu) * jax.lax.rsqrt(var + LN_EPS) * gamma + beta


def _gelu(x):
    # exact (erf) GELU, matching torch.nn.GELU default / BERT "gelu".
    # TODO(synk): tanh-approx GELU would use the EUP slot at large FFN widths.
    return 0.5 * x * (1.0 + jax.lax.erf(x * 0.7071067811865475))


def _softmax_last(x, approx):
    m = jnp.max(x, axis=-1, keepdims=True)
    e = jnp.exp(x - m)
    s = jnp.sum(e, axis=-1, keepdims=True)
    if approx:
        return e * pl.reciprocal(s, approx=True)   # EUP; attention rows only
    return e / s                                    # exact for the classifier


# --------------------------- fused Pallas kernel ------------------------------
def fused_forward_kernel(emb_ref, bias_ref, vec_ref,
                         wqkv_ref, wo_ref, w1_ref, w2_ref, wc_ref,
                         out_ref, ctx_scratch):
    # Per grid step (one batch element):
    #   emb  [1, S, H] f32   summed word+pos+type embeddings
    #   bias [1, 1, S] f32   additive key-padding bias (0 attend / -1e9 pad)
    #   vec  [NUM_VEC_ROWS, 128] f32  packed LN params + all biases (see layout)
    #   wqkv [L, H, 3H] bf16 (Wq pre-scaled by 1/sqrt(HD)), wo [L, H, H] bf16
    #   w1   [L, H, F]  bf16, w2 [L, F, H] bf16, wc [H, 128] bf16 (zero-padded)
    #   out  [S, 128] f32    softmax probs for every row of this batch element
    #   ctx_scratch [S, H] f32  per-head context assembled at lane offsets
    seq = emb_ref.shape[1]

    x = emb_ref[0].astype(jnp.float32)                                   # (S, H)
    x = _layernorm(x, vec_ref[VEC_ROW_EMB_LN_G, :HIDDEN],
                   vec_ref[VEC_ROW_EMB_LN_B, :HIDDEN])

    # Hoisted attention bias: materialize the (S, S) broadcast ONCE and reuse it
    # for every head of every layer (JAX does not CSE broadcast_in_dim).
    att_bias = jnp.broadcast_to(bias_ref[0], (seq, seq))                 # (S, S)

    for l in range(NUM_LAYERS):                                          # static unroll
        r = VEC_ROW_LAYER0 + VEC_ROWS_PER_LAYER * l

        # --- fused QKV projection: one (S,H)x(H,3H) bf16 matmul, f32 accumulate
        qkv = jnp.dot(x.astype(jnp.bfloat16), wqkv_ref[l],
                      preferred_element_type=jnp.float32) + vec_ref[r + VEC_BQKV, :3 * HIDDEN]

        # --- multi-head attention: NH=2 pure-2D chains; context heads written to
        #     a VMEM scratch at lane offsets, then ONE (S,H)x(H,H) output matmul.
        for head in range(NUM_HEADS):                                    # static unroll
            q_h = qkv[:, head * HEAD_DIM:(head + 1) * HEAD_DIM].astype(jnp.bfloat16)
            k_h = qkv[:, HIDDEN + head * HEAD_DIM:
                      HIDDEN + (head + 1) * HEAD_DIM].astype(jnp.bfloat16)
            v_h = qkv[:, 2 * HIDDEN + head * HEAD_DIM:
                      2 * HIDDEN + (head + 1) * HEAD_DIM].astype(jnp.bfloat16)

            scores = jnp.einsum('qd,kd->qk', q_h, k_h,
                                preferred_element_type=jnp.float32)      # (S, S)
            probs = _softmax_last(scores + att_bias, approx=True)
            ctx_h = jnp.dot(probs.astype(jnp.bfloat16), v_h,
                            preferred_element_type=jnp.float32)          # (S, HD)
            ctx_scratch[:, head * HEAD_DIM:(head + 1) * HEAD_DIM] = ctx_h

        attn_out = jnp.dot(ctx_scratch[...].astype(jnp.bfloat16), wo_ref[l],
                           preferred_element_type=jnp.float32) + vec_ref[r + VEC_BO, :HIDDEN]
        x = _layernorm(x + attn_out,
                       vec_ref[r + VEC_LN1_G, :HIDDEN], vec_ref[r + VEC_LN1_B, :HIDDEN])

        # --- feed-forward (element-wise math stays f32) -----------------------
        h1 = _gelu(jnp.dot(x.astype(jnp.bfloat16), w1_ref[l],
                           preferred_element_type=jnp.float32) + vec_ref[r + VEC_B1, :FFN])
        ffn_out = jnp.dot(h1.astype(jnp.bfloat16), w2_ref[l],
                          preferred_element_type=jnp.float32) + vec_ref[r + VEC_B2, :HIDDEN]
        x = _layernorm(x + ffn_out,
                       vec_ref[r + VEC_LN2_G, :HIDDEN], vec_ref[r + VEC_LN2_B, :HIDDEN])

    # --- classifier head (dropout = identity in eval) -------------------------
    # Lane-dense 128-wide slab; padded labels carry a -1e30 bias so exp underflows
    # to exactly 0.  CLS row (row 0 of this block) is selected outside the kernel.
    logits = jnp.dot(x.astype(jnp.bfloat16), wc_ref[...],
                     preferred_element_type=jnp.float32) + vec_ref[VEC_ROW_BC, :]
    out_ref[...] = _softmax_last(logits, approx=False).astype(out_ref.dtype)


# --------------------------- parameter init -----------------------------------
def init_params(key):
    """Torch-layout parameters (linear weights stored [in, out])."""
    def normal(key, shape, scale=0.02):
        return (scale * jax.random.normal(key, shape)).astype(jnp.float32)

    keys = iter(jax.random.split(key, 64))
    p = {
        'word_emb': normal(next(keys), (VOCAB, HIDDEN)),
        'pos_emb': normal(next(keys), (MAX_POS, HIDDEN)),
        'type_emb': normal(next(keys), (TYPE_VOCAB, HIDDEN)),
        'emb_ln_g': jnp.ones((HIDDEN,), jnp.float32),
        'emb_ln_b': jnp.zeros((HIDDEN,), jnp.float32),
        'layers': [],
        'wc': normal(next(keys), (HIDDEN, NUM_LABELS)),
        'bc': jnp.zeros((NUM_LABELS,), jnp.float32),
    }
    for _ in range(NUM_LAYERS):
        layer = (
            normal(next(keys), (HIDDEN, HIDDEN)), jnp.zeros((HIDDEN,), jnp.float32),  # wq, bq
            normal(next(keys), (HIDDEN, HIDDEN)), jnp.zeros((HIDDEN,), jnp.float32),  # wk, bk
            normal(next(keys), (HIDDEN, HIDDEN)), jnp.zeros((HIDDEN,), jnp.float32),  # wv, bv
            normal(next(keys), (HIDDEN, HIDDEN)), jnp.zeros((HIDDEN,), jnp.float32),  # wo, bo
            jnp.ones((HIDDEN,), jnp.float32), jnp.zeros((HIDDEN,), jnp.float32),      # ln1 g,b
            normal(next(keys), (HIDDEN, FFN)), jnp.zeros((FFN,), jnp.float32),        # w1, b1
            normal(next(keys), (FFN, HIDDEN)), jnp.zeros((HIDDEN,), jnp.float32),     # w2, b2
            jnp.ones((HIDDEN,), jnp.float32), jnp.zeros((HIDDEN,), jnp.float32),      # ln2 g,b
        )
        p['layers'].append(layer)
    return p


def pack_params(p):
    """Fold the attention scale into Wq/bq, stack per-layer weights (bf16 matmul
    operands), and pack every small 1-D parameter into ONE padded (rows,128) slab."""
    scale = 1.0 / float(HEAD_DIM) ** 0.5

    def row(v, fill=0.0):
        r = jnp.full((PAD_LABELS,), fill, jnp.float32)
        return r.at[:v.shape[0]].set(v.astype(jnp.float32))

    wqkv, wo, w1, w2 = [], [], [], []
    vec_rows = [row(p['emb_ln_g']), row(p['emb_ln_b'])]
    for (wq, bq, wk, bk, wv, bv, wo_l, bo_l,
         l1g, l1b, w1_l, b1_l, w2_l, b2_l, l2g, l2b) in p['layers']:
        wqkv.append(jnp.concatenate([wq * scale, wk, wv], axis=1))       # (H, 3H)
        wo.append(wo_l)                                                  # (H, H), rows head-major
        w1.append(w1_l)
        w2.append(w2_l)
        vec_rows += [row(l1g), row(l1b), row(l2g), row(l2b),
                     row(jnp.concatenate([bq * scale, bk, bv])),         # bqkv (3H,)
                     row(bo_l), row(b1_l), row(b2_l)]
    vec_rows.append(row(p['bc'], fill=-1e30))                            # classifier bias, -1e30 pad

    wc_pad = jnp.zeros((HIDDEN, PAD_LABELS), jnp.float32).at[:, :NUM_LABELS].set(p['wc'])

    return {
        'word_emb': p['word_emb'], 'pos_emb': p['pos_emb'], 'type_emb': p['type_emb'],
        'vec': jnp.stack(vec_rows),                                      # (NUM_VEC_ROWS, 128) f32
        'wqkv': jnp.stack(wqkv).astype(jnp.bfloat16),                    # (L, H, 3H)
        'wo': jnp.stack(wo).astype(jnp.bfloat16),                        # (L, H, H)
        'w1': jnp.stack(w1).astype(jnp.bfloat16),                        # (L, H, F)
        'w2': jnp.stack(w2).astype(jnp.bfloat16),                        # (L, F, H)
        'wc': wc_pad.astype(jnp.bfloat16),                               # (H, 128)
    }


# ------------------------------ forward ----------------------------------------
@jax.jit
def forward(packed, input_ids, attention_mask, token_type_ids):
    B, S = input_ids.shape
    assert S <= MAX_POS
    # Embedding gathers stay in plain JAX (data-dependent gather); everything else
    # runs inside one Pallas call with a batch-parallel grid.
    word = jnp.take(packed['word_emb'], input_ids, axis=0)               # (B, S, H)
    pos = packed['pos_emb'][:S][None, :, :]                              # (1, S, H)
    typ = jnp.take(packed['type_emb'], token_type_ids, axis=0)           # (B, S, H)
    emb = (word + pos + typ).astype(jnp.float32)
    bias = ((1.0 - attention_mask.astype(jnp.float32)) * (-1e9))[:, None, :]   # (B, 1, S)

    probs_all = pl.pallas_call(
        fused_forward_kernel,
        out_shape=jax.ShapeDtypeStruct((B * S, PAD_LABELS), jnp.float32),
        grid=(B,),
        in_specs=[
            pl.BlockSpec((1, S, HIDDEN), lambda b: (b, 0, 0)),                      # emb
            pl.BlockSpec((1, 1, S), lambda b: (b, 0, 0)),                           # bias
            pl.BlockSpec((NUM_VEC_ROWS, PAD_LABELS), lambda b: (0, 0)),             # vec slab
            pl.BlockSpec((NUM_LAYERS, HIDDEN, 3 * HIDDEN), lambda b: (0, 0, 0)),    # wqkv
            pl.BlockSpec((NUM_LAYERS, HIDDEN, HIDDEN), lambda b: (0, 0, 0)),        # wo
            pl.BlockSpec((NUM_LAYERS, HIDDEN, FFN), lambda b: (0, 0, 0)),           # w1
            pl.BlockSpec((NUM_LAYERS, FFN, HIDDEN), lambda b: (0, 0, 0)),           # w2
            pl.BlockSpec((HIDDEN, PAD_LABELS), lambda b: (0, 0)),                   # wc
        ],
        out_specs=pl.BlockSpec((S, PAD_LABELS), lambda b: (b, 0)),
        scratch_shapes=[pltpu.VMEM((S, HIDDEN), jnp.float32)],
        compiler_params=pltpu.CompilerParams(dimension_semantics=("parallel",)),
    )(emb, bias, packed['vec'], packed['wqkv'], packed['wo'],
      packed['w1'], packed['w2'], packed['wc'])

    # CLS token = row 0 of each batch block; real labels occupy the first lanes.
    return probs_all[::S, :NUM_LABELS]                                    # (B, NUM_LABELS)


# --------------------------- pure-JAX reference ---------------------------------
def forward_reference(p, input_ids, attention_mask, token_type_ids):
    B, S = input_ids.shape

    def ln(x, g, b):
        mu = x.mean(-1, keepdims=True)
        var = ((x - mu) ** 2).mean(-1, keepdims=True)
        return (x - mu) / jnp.sqrt(var + LN_EPS) * g + b

    x = (jnp.take(p['word_emb'], input_ids, axis=0) + p['pos_emb'][:S][None]
         + jnp.take(p['type_emb'], token_type_ids, axis=0))
    x = ln(x, p['emb_ln_g'], p['emb_ln_b'])
    bias = (1.0 - attention_mask.astype(jnp.float32))[:, None, None, :] * (-1e9)

    for (wq, bq, wk, bk, wv, bv, wo, bo,
         g1, be1, w1, bf1, w2, bf2, g2, be2) in p['layers']:
        def heads(t):
            return t.reshape(B, S, NUM_HEADS, HEAD_DIM).transpose(0, 2, 1, 3)
        q, k, v = heads(x @ wq + bq), heads(x @ wk + bk), heads(x @ wv + bv)
        s = (q @ k.transpose(0, 1, 3, 2)) / jnp.sqrt(jnp.float32(HEAD_DIM)) + bias
        a = jax.nn.softmax(s, axis=-1)
        ctx = (a @ v).transpose(0, 2, 1, 3).reshape(B, S, HIDDEN)
        x = ln(x + ctx @ wo + bo, g1, be1)
        h = jax.nn.gelu(x @ w1 + bf1, approximate=False)
        x = ln(x + h @ w2 + bf2, g2, be2)

    logits = x[:, 0, :] @ p['wc'] + p['bc']
    return jax.nn.softmax(logits, axis=-1)


# -------------------------------- main ------------------------------------------
if __name__ == "__main__":
    key = jax.random.PRNGKey(0)
    k_param, k_ids, k_type = jax.random.split(key, 3)

    params = init_params(k_param)
    packed = pack_params(params)

    input_ids = jax.random.randint(k_ids, (BATCH, SEQ), 0, VOCAB, dtype=jnp.int32)
    attention_mask = jnp.ones((BATCH, SEQ), dtype=jnp.int32).at[1, SEQ - 2:].set(0)
    token_type_ids = jax.random.randint(k_type, (BATCH, SEQ), 0, TYPE_VOCAB, dtype=jnp.int32)

    probs = jax.block_until_ready(forward(packed, input_ids, attention_mask, token_type_ids))

    assert probs.shape == (BATCH, NUM_LABELS)
    row_sums = jnp.sum(probs, axis=1)
    assert bool(jnp.all(jnp.abs(row_sums - 1.0) < 1e-4))

    # correctness vs. exact f32 pure-JAX reference (bf16 matmul operands + approx
    # reciprocal in the attention softmax -> deviation well under 5e-3).
    ref = forward_reference(params, input_ids, attention_mask, token_type_ids)
    assert bool(jnp.max(jnp.abs(probs - ref)) < 5e-3)

    print("KERNEL_OK")
</pallas_src>

<mosaic_0001>
module attributes {stable_mosaic.version = 11 : i64} {
  func.func @fused_forward_kernel(%arg0: i32, %arg1: memref<1x8x32xf32, #tpu.memory_space<vmem>>, %arg2: memref<1x1x8xf32, #tpu.memory_space<vmem>>, %arg3: memref<19x128xf32, #tpu.memory_space<vmem>>, %arg4: memref<2x32x96xbf16, #tpu.memory_space<vmem>>, %arg5: memref<2x32x32xbf16, #tpu.memory_space<vmem>>, %arg6: memref<2x32x64xbf16, #tpu.memory_space<vmem>>, %arg7: memref<2x64x32xbf16, #tpu.memory_space<vmem>>, %arg8: memref<32x128xbf16, #tpu.memory_space<vmem>>, %arg9: memref<8x128xf32, #tpu.memory_space<vmem>>, %arg10: memref<8x32xf32, #tpu.memory_space<vmem>>) attributes {dimension_semantics = [#tpu.dimension_semantics<parallel>], iteration_bounds = array<i64: 2>, scalar_prefetch = 0 : i64, scratch_operands = 1 : i64, tpu.core_type = #tpu.core_type<tc>, window_params = [{transform_indices = @transform_0, window_bounds = array<i64: 1, 8, 32>}, {transform_indices = @transform_1, window_bounds = array<i64: 1, 1, 8>}, {pipeline_mode = #tpu.pipeline_mode<synchronous>, transform_indices = @transform_2, window_bounds = array<i64: 19, 128>}, {pipeline_mode = #tpu.pipeline_mode<synchronous>, transform_indices = @transform_3, window_bounds = array<i64: 2, 32, 96>}, {pipeline_mode = #tpu.pipeline_mode<synchronous>, transform_indices = @transform_4, window_bounds = array<i64: 2, 32, 32>}, {pipeline_mode = #tpu.pipeline_mode<synchronous>, transform_indices = @transform_5, window_bounds = array<i64: 2, 32, 64>}, {pipeline_mode = #tpu.pipeline_mode<synchronous>, transform_indices = @transform_6, window_bounds = array<i64: 2, 64, 32>}, {pipeline_mode = #tpu.pipeline_mode<synchronous>, transform_indices = @transform_7, window_bounds = array<i64: 32, 128>}, {transform_indices = @transform_8, window_bounds = array<i64: 8, 128>}]} {
    %c0 = arith.constant 0 : index
    %c0_0 = arith.constant 0 : index
    %c0_1 = arith.constant 0 : index
    %0 = vector.load %arg1[%c0, %c0_0, %c0_1] : memref<1x8x32xf32, #tpu.memory_space<vmem>>, vector<1x8x32xf32>
    %1 = vector.shape_cast %0 : vector<1x8x32xf32> to vector<8x32xf32>
    %c0_2 = arith.constant 0 : index
    %c0_3 = arith.constant 0 : index
    %2 = vector.load %arg3[%c0_2, %c0_3] : memref<19x128xf32, #tpu.memory_space<vmem>>, vector<1x32xf32>
    %3 = vector.shape_cast %2 : vector<1x32xf32> to vector<32xf32>
    %c1 = arith.constant 1 : index
    %c0_4 = arith.constant 0 : index
    %4 = vector.load %arg3[%c1, %c0_4] : memref<19x128xf32, #tpu.memory_space<vmem>>, vector<1x32xf32>
    %5 = vector.shape_cast %4 : vector<1x32xf32> to vector<32xf32>
    %cst = arith.constant dense<0.000000e+00> : vector<8xf32>
    %6 = vector.multi_reduction <add>, %1, %cst [1] : vector<8x32xf32> to vector<8xf32>
    %7 = vector.shape_cast %6 : vector<8xf32> to vector<8x1xf32>
    %cst_5 = arith.constant 3.200000e+01 : f32
    %8 = vector.broadcast %cst_5 : f32 to vector<8x1xf32>
    %9 = arith.divf %7, %8 : vector<8x1xf32>
    %10 = vector.broadcast %9 : vector<8x1xf32> to vector<8x32xf32>
    %11 = arith.subf %1, %10 : vector<8x32xf32>
    %12 = arith.mulf %11, %11 : vector<8x32xf32>
    %cst_6 = arith.constant dense<0.000000e+00> : vector<8xf32>
    %13 = vector.multi_reduction <add>, %12, %cst_6 [1] : vector<8x32xf32> to vector<8xf32>
    %14 = vector.shape_cast %13 : vector<8xf32> to vector<8x1xf32>
    %cst_7 = arith.constant 3.200000e+01 : f32
    %15 = vector.broadcast %cst_7 : f32 to vector<8x1xf32>
    %16 = arith.divf %14, %15 : vector<8x1xf32>
    %17 = vector.broadcast %9 : vector<8x1xf32> to vector<8x32xf32>
    %18 = arith.subf %1, %17 : vector<8x32xf32>
    %cst_8 = arith.constant 9.99999996E-13 : f32
    %19 = vector.broadcast %cst_8 : f32 to vector<8x1xf32>
    %20 = arith.addf %16, %19 : vector<8x1xf32>
    %21 = math.rsqrt %20 : vector<8x1xf32>
    %22 = vector.broadcast %21 : vector<8x1xf32> to vector<8x32xf32>
    %23 = arith.mulf %18, %22 : vector<8x32xf32>
    %24 = vector.shape_cast %3 : vector<32xf32> to vector<1x32xf32>
    %25 = vector.broadcast %24 : vector<1x32xf32> to vector<8x32xf32>
    %26 = arith.mulf %23, %25 : vector<8x32xf32>
    %27 = vector.shape_cast %5 : vector<32xf32> to vector<1x32xf32>
    %28 = vector.broadcast %27 : vector<1x32xf32> to vector<8x32xf32>
    %29 = arith.addf %26, %28 : vector<8x32xf32>
    %c0_9 = arith.constant 0 : index
    %c0_10 = arith.constant 0 : index
    %c0_11 = arith.constant 0 : index
    %30 = vector.load %arg2[%c0_9, %c0_10, %c0_11] : memref<1x1x8xf32, #tpu.memory_space<vmem>>, vector<1x1x8xf32>
    %31 = vector.shape_cast %30 : vector<1x1x8xf32> to vector<1x8xf32>
    %32 = vector.shape_cast %31 : vector<1x8xf32> to vector<1x8xf32>
    %33 = vector.broadcast %32 : vector<1x8xf32> to vector<8x8xf32>
    %34 = arith.truncf %29 : vector<8x32xf32> to vector<8x32xbf16>
    %c0_12 = arith.constant 0 : index
    %c0_13 = arith.constant 0 : index
    %c0_14 = arith.constant 0 : index
    %35 = vector.load %arg4[%c0_12, %c0_13, %c0_14] : memref<2x32x96xbf16, #tpu.memory_space<vmem>>, vector<1x32x96xbf16>
    %36 = vector.shape_cast %35 : vector<1x32x96xbf16> to vector<32x96xbf16>
    %cst_15 = arith.constant dense<0.000000e+00> : vector<8x96xf32>
    %37 = tpu.matmul %34, %36, %cst_15 {dimension_numbers = #tpu.dot_dimension_numbers<[1], [0], [0], [1], [0, 0, 1, 1], [], []>} : vector<8x32xbf16>, vector<32x96xbf16>, vector<8x96xf32> -> vector<8x96xf32>
    %c6 = arith.constant 6 : index
    %c0_16 = arith.constant 0 : index
    %38 = vector.load %arg3[%c6, %c0_16] : memref<19x128xf32, #tpu.memory_space<vmem>>, vector<1x96xf32>
    %39 = vector.shape_cast %38 : vector<1x96xf32> to vector<96xf32>
    %40 = vector.shape_cast %39 : vector<96xf32> to vector<1x96xf32>
    %41 = vector.broadcast %40 : vector<1x96xf32> to vector<8x96xf32>
    %42 = arith.addf %37, %41 : vector<8x96xf32>
    %43 = vector.extract_strided_slice %42 {offsets = [0, 0], sizes = [8, 16], strides = [1, 1]} : vector<8x96xf32> to vector<8x16xf32>
    %44 = arith.truncf %43 : vector<8x16xf32> to vector<8x16xbf16>
    %45 = vector.extract_strided_slice %42 {offsets = [0, 32], sizes = [8, 16], strides = [1, 1]} : vector<8x96xf32> to vector<8x16xf32>
    %46 = arith.truncf %45 : vector<8x16xf32> to vector<8x16xbf16>
    %47 = vector.extract_strided_slice %42 {offsets = [0, 64], sizes = [8, 16], strides = [1, 1]} : vector<8x96xf32> to vector<8x16xf32>
    %48 = arith.truncf %47 : vector<8x16xf32> to vector<8x16xbf16>
    "tpu.trace_start"() <{level = 10 : i32, message = "qd,kd->qk"}> : () -> ()
    %cst_17 = arith.constant dense<0.000000e+00> : vector<8x8xf32>
    %49 = tpu.matmul %44, %46, %cst_17 {dimension_numbers = #tpu.dot_dimension_numbers<[1], [1], [0], [0], [0, 0, 1, 0], [], []>} : vector<8x16xbf16>, vector<8x16xbf16>, vector<8x8xf32> -> vector<8x8xf32>
    "tpu.trace_stop"() : () -> ()
    %50 = arith.addf %49, %33 : vector<8x8xf32>
    %cst_18 = arith.constant dense<0xFF800000> : vector<8xf32>
    %51 = vector.multi_reduction <maximumf>, %50, %cst_18 [1] : vector<8x8xf32> to vector<8xf32>
    %52 = vector.shape_cast %51 : vector<8xf32> to vector<8x1xf32>
    %53 = vector.broadcast %52 : vector<8x1xf32> to vector<8x8xf32>
    %54 = arith.subf %50, %53 : vector<8x8xf32>
    %55 = math.exp %54 : vector<8x8xf32>
    %cst_19 = arith.constant dense<0.000000e+00> : vector<8xf32>
    %56 = vector.multi_reduction <add>, %55, %cst_19 [1] : vector<8x8xf32> to vector<8xf32>
    %57 = vector.shape_cast %56 : vector<8xf32> to vector<8x1xf32>
    %58 = tpu.reciprocal %57 {approx = true} : vector<8x1xf32> -> vector<8x1xf32>
    %59 = vector.broadcast %58 : vector<8x1xf32> to vector<8x8xf32>
    %60 = arith.mulf %55, %59 : vector<8x8xf32>
    %61 = arith.truncf %60 : vector<8x8xf32> to vector<8x8xbf16>
    %cst_20 = arith.constant dense<0.000000e+00> : vector<8x16xf32>
    %62 = tpu.matmul %61, %48, %cst_20 {dimension_numbers = #tpu.dot_dimension_numbers<[1], [0], [0], [1], [0, 0, 1, 1], [], []>} : vector<8x8xbf16>, vector<8x16xbf16>, vector<8x16xf32> -> vector<8x16xf32>
    %c0_21 = arith.constant 0 : index
    %c0_22 = arith.constant 0 : index
    %63 = vector.load %arg10[%c0_21, %c0_22] : memref<8x32xf32, #tpu.memory_space<vmem>>, vector<8x16xf32>
    tpu.vector_store %arg10[%c0_21, %c0_22], %62 {strides = array<i32>} : memref<8x32xf32, #tpu.memory_space<vmem>>, vector<8x16xf32>,
    %64 = vector.extract_strided_slice %42 {offsets = [0, 16], sizes = [8, 16], strides = [1, 1]} : vector<8x96xf32> to vector<8x16xf32>
    %65 = arith.truncf %64 : vector<8x16xf32> to vector<8x16xbf16>
    %66 = vector.extract_strided_slice %42 {offsets = [0, 48], sizes = [8, 16], strides = [1, 1]} : vector<8x96xf32> to vector<8x16xf32>
    %67 = arith.truncf %66 : vector<8x16xf32> to vector<8x16xbf16>
    %68 = vector.extract_strided_slice %42 {offsets = [0, 80], sizes = [8, 16], strides = [1, 1]} : vector<8x96xf32> to vector<8x16xf32>
    %69 = arith.truncf %68 : vector<8x16xf32> to vector<8x16xbf16>
    "tpu.trace_start"() <{level = 10 : i32, message = "qd,kd->qk"}> : () -> ()
    %cst_23 = arith.constant dense<0.000000e+00> : vector<8x8xf32>
    %70 = tpu.matmul %65, %67, %cst_23 {dimension_numbers = #tpu.dot_dimension_numbers<[1], [1], [0], [0], [0, 0, 1, 0], [], []>} : vector<8x16xbf16>, vector<8x16xbf16>, vector<8x8xf32> -> vector<8x8xf32>
    "tpu.trace_stop"() : () -> ()
    %71 = arith.addf %70, %33 : vector<8x8xf32>
    %cst_24 = arith.constant dense<0xFF800000> : vector<8xf32>
    %72 = vector.multi_reduction <maximumf>, %71, %cst_24 [1] : vector<8x8xf32> to vector<8xf32>
    %73 = vector.shape_cast %72 : vector<8xf32> to vector<8x1xf32>
    %74 = vector.broadcast %73 : vector<8x1xf32> to vector<8x8xf32>
    %75 = arith.subf %71, %74 : vector<8x8xf32>
    %76 = math.exp %75 : vector<8x8xf32>
    %cst_25 = arith.constant dense<0.000000e+00> : vector<8xf32>
    %77 = vector.multi_reduction <add>, %76, %cst_25 [1] : vector<8x8xf32> to vector<8xf32>
    %78 = vector.shape_cast %77 : vector<8xf32> to vector<8x1xf32>
    %79 = tpu.reciprocal %78 {approx = true} : vector<8x1xf32> -> vector<8x1xf32>
    %80 = vector.broadcast %79 : vector<8x1xf32> to vector<8x8xf32>
    %81 = arith.mulf %76, %80 : vector<8x8xf32>
    %82 = arith.truncf %81 : vector<8x8xf32> to vector<8x8xbf16>
    %cst_26 = arith.constant dense<0.000000e+00> : vector<8x16xf32>
    %83 = tpu.matmul %82, %69, %cst_26 {dimension_numbers = #tpu.dot_dimension_numbers<[1], [0], [0], [1], [0, 0, 1, 1], [], []>} : vector<8x8xbf16>, vector<8x16xbf16>, vector<8x16xf32> -> vector<8x16xf32>
    %c0_27 = arith.constant 0 : index
    %c16 = arith.constant 16 : index
    %84 = vector.load %arg10[%c0_27, %c16] : memref<8x32xf32, #tpu.memory_space<vmem>>, vector<8x16xf32>
    tpu.vector_store %arg10[%c0_27, %c16], %83 {strides = array<i32>} : memref<8x32xf32, #tpu.memory_space<vmem>>, vector<8x16xf32>,
    %c0_28 = arith.constant 0 : index
    %c0_29 = arith.constant 0 : index
    %85 = vector.load %arg10[%c0_28, %c0_29] : memref<8x32xf32, #tpu.memory_space<vmem>>, vector<8x32xf32>
    %86 = arith.truncf %85 : vector<8x32xf32> to vector<8x32xbf16>
    %c0_30 = arith.constant 0 : index
    %c0_31 = arith.constant 0 : index
    %c0_32 = arith.constant 0 : index
    %87 = vector.load %arg5[%c0_30, %c0_31, %c0_32] : memref<2x32x32xbf16, #tpu.memory_space<vmem>>, vector<1x32x32xbf16>
    %88 = vector.shape_cast %87 : vector<1x32x32xbf16> to vector<32x32xbf16>
    %cst_33 = arith.constant dense<0.000000e+00> : vector<8x32xf32>
    %89 = tpu.matmul %86, %88, %cst_33 {dimension_numbers = #tpu.dot_dimension_numbers<[1], [0], [0], [1], [0, 0, 1, 1], [], []>} : vector<8x32xbf16>, vector<32x32xbf16>, vector<8x32xf32> -> vector<8x32xf32>
    %c7 = arith.constant 7 : index
    %c0_34 = arith.constant 0 : index
    %90 = vector.load %arg3[%c7, %c0_34] : memref<19x128xf32, #tpu.memory_space<vmem>>, vector<1x32xf32>
    %91 = vector.shape_cast %90 : vector<1x32xf32> to vector<32xf32>
    %92 = vector.shape_cast %91 : vector<32xf32> to vector<1x32xf32>
    %93 = vector.broadcast %92 : vector<1x32xf32> to vector<8x32xf32>
    %94 = arith.addf %89, %93 : vector<8x32xf32>
    %95 = arith.addf %29, %94 : vector<8x32xf32>
    %c2 = arith.constant 2 : index
    %c0_35 = arith.constant 0 : index
    %96 = vector.load %arg3[%c2, %c0_35] : memref<19x128xf32, #tpu.memory_space<vmem>>, vector<1x32xf32>
    %97 = vector.shape_cast %96 : vector<1x32xf32> to vector<32xf32>
    %c3 = arith.constant 3 : index
    %c0_36 = arith.constant 0 : index
    %98 = vector.load %arg3[%c3, %c0_36] : memref<19x128xf32, #tpu.memory_space<vmem>>, vector<1x32xf32>
    %99 = vector.shape_cast %98 : vector<1x32xf32> to vector<32xf32>
    %cst_37 = arith.constant dense<0.000000e+00> : vector<8xf32>
    %100 = vector.multi_reduction <add>, %95, %cst_37 [1] : vector<8x32xf32> to vector<8xf32>
    %101 = vector.shape_cast %100 : vector<8xf32> to vector<8x1xf32>
    %cst_38 = arith.constant 3.200000e+01 : f32
    %102 = vector.broadcast %cst_38 : f32 to vector<8x1xf32>
    %103 = arith.divf %101, %102 : vector<8x1xf32>
    %104 = vector.broadcast %103 : vector<8x1xf32> to vector<8x32xf32>
    %105 = arith.subf %95, %104 : vector<8x32xf32>
    %106 = arith.mulf %105, %105 : vector<8x32xf32>
    %cst_39 = arith.constant dense<0.000000e+00> : vector<8xf32>
    %107 = vector.multi_reduction <add>, %106, %cst_39 [1] : vector<8x32xf32> to vector<8xf32>
    %108 = vector.shape_cast %107 : vector<8xf32> to vector<8x1xf32>
    %cst_40 = arith.constant 3.200000e+01 : f32
    %109 = vector.broadcast %cst_40 : f32 to vector<8x1xf32>
    %110 = arith.divf %108, %109 : vector<8x1xf32>
    %111 = vector.broadcast %103 : vector<8x1xf32> to vector<8x32xf32>
    %112 = arith.subf %95, %111 : vector<8x32xf32>
    %cst_41 = arith.constant 9.99999996E-13 : f32
    %113 = vector.broadcast %cst_41 : f32 to vector<8x1xf32>
    %114 = arith.addf %110, %113 : vector<8x1xf32>
    %115 = math.rsqrt %114 : vector<8x1xf32>
    %116 = vector.broadcast %115 : vector<8x1xf32> to vector<8x32xf32>
    %117 = arith.mulf %112, %116 : vector<8x32xf32>
    %118 = vector.shape_cast %97 : vector<32xf32> to vector<1x32xf32>
    %119 = vector.broadcast %118 : vector<1x32xf32> to vector<8x32xf32>
    %120 = arith.mulf %117, %119 : vector<8x32xf32>
    %121 = vector.shape_cast %99 : vector<32xf32> to vector<1x32xf32>
    %122 = vector.broadcast %121 : vector<1x32xf32> to vector<8x32xf32>
    %123 = arith.addf %120, %122 : vector<8x32xf32>
    %124 = arith.truncf %123 : vector<8x32xf32> to vector<8x32xbf16>
    %c0_42 = arith.constant 0 : index
    %c0_43 = arith.constant 0 : index
    %c0_44 = arith.constant 0 : index
    %125 = vector.load %arg6[%c0_42, %c0_43, %c0_44] : memref<2x32x64xbf16, #tpu.memory_space<vmem>>, vector<1x32x64xbf16>
    %126 = vector.shape_cast %125 : vector<1x32x64xbf16> to vector<32x64xbf16>
    %cst_45 = arith.constant dense<0.000000e+00> : vector<8x64xf32>
    %127 = tpu.matmul %124, %126, %cst_45 {dimension_numbers = #tpu.dot_dimension_numbers<[1], [0], [0], [1], [0, 0, 1, 1], [], []>} : vector<8x32xbf16>, vector<32x64xbf16>, vector<8x64xf32> -> vector<8x64xf32>
    %c8 = arith.constant 8 : index
    %c0_46 = arith.constant 0 : index
    %128 = vector.load %arg3[%c8, %c0_46] : memref<19x128xf32, #tpu.memory_space<vmem>>, vector<1x64xf32>
    %129 = vector.shape_cast %128 : vector<1x64xf32> to vector<64xf32>
    %130 = vector.shape_cast %129 : vector<64xf32> to vector<1x64xf32>
    %131 = vector.broadcast %130 : vector<1x64xf32> to vector<8x64xf32>
    %132 = arith.addf %127, %131 : vector<8x64xf32>
    %cst_47 = arith.constant 5.000000e-01 : f32
    %133 = vector.broadcast %cst_47 : f32 to vector<8x64xf32>
    %134 = arith.mulf %133, %132 : vector<8x64xf32>
    %cst_48 = arith.constant 0.707106769 : f32
    %135 = vector.broadcast %cst_48 : f32 to vector<8x64xf32>
    %136 = arith.mulf %132, %135 : vector<8x64xf32>
    %137 = math.erf %136 : vector<8x64xf32>
    %cst_49 = arith.constant 1.000000e+00 : f32
    %138 = vector.broadcast %cst_49 : f32 to vector<8x64xf32>
    %139 = arith.addf %138, %137 : vector<8x64xf32>
    %140 = arith.mulf %134, %139 : vector<8x64xf32>
    %141 = arith.truncf %140 : vector<8x64xf32> to vector<8x64xbf16>
    %c0_50 = arith.constant 0 : index
    %c0_51 = arith.constant 0 : index
    %c0_52 = arith.constant 0 : index
    %142 = vector.load %arg7[%c0_50, %c0_51, %c0_52] : memref<2x64x32xbf16, #tpu.memory_space<vmem>>, vector<1x64x32xbf16>
    %143 = vector.shape_cast %142 : vector<1x64x32xbf16> to vector<64x32xbf16>
    %cst_53 = arith.constant dense<0.000000e+00> : vector<8x32xf32>
    %144 = tpu.matmul %141, %143, %cst_53 {dimension_numbers = #tpu.dot_dimension_numbers<[1], [0], [0], [1], [0, 0, 1, 1], [], []>} : vector<8x64xbf16>, vector<64x32xbf16>, vector<8x32xf32> -> vector<8x32xf32>
    %c9 = arith.constant 9 : index
    %c0_54 = arith.constant 0 : index
    %145 = vector.load %arg3[%c9, %c0_54] : memref<19x128xf32, #tpu.memory_space<vmem>>, vector<1x32xf32>
    %146 = vector.shape_cast %145 : vector<1x32xf32> to vector<32xf32>
    %147 = vector.shape_cast %146 : vector<32xf32> to vector<1x32xf32>
    %148 = vector.broadcast %147 : vector<1x32xf32> to vector<8x32xf32>
    %149 = arith.addf %144, %148 : vector<8x32xf32>
    %150 = arith.addf %123, %149 : vector<8x32xf32>
    %c4 = arith.constant 4 : index
    %c0_55 = arith.constant 0 : index
    %151 = vector.load %arg3[%c4, %c0_55] : memref<19x128xf32, #tpu.memory_space<vmem>>, vector<1x32xf32>
    %152 = vector.shape_cast %151 : vector<1x32xf32> to vector<32xf32>
    %c5 = arith.constant 5 : index
    %c0_56 = arith.constant 0 : index
    %153 = vector.load %arg3[%c5, %c0_56] : memref<19x128xf32, #tpu.memory_space<vmem>>, vector<1x32xf32>
    %154 = vector.shape_cast %153 : vector<1x32xf32> to vector<32xf32>
    %cst_57 = arith.constant dense<0.000000e+00> : vector<8xf32>
    %155 = vector.multi_reduction <add>, %150, %cst_57 [1] : vector<8x32xf32> to vector<8xf32>
    %156 = vector.shape_cast %155 : vector<8xf32> to vector<8x1xf32>
    %cst_58 = arith.constant 3.200000e+01 : f32
    %157 = vector.broadcast %cst_58 : f32 to vector<8x1xf32>
    %158 = arith.divf %156, %157 : vector<8x1xf32>
    %159 = vector.broadcast %158 : vector<8x1xf32> to vector<8x32xf32>
    %160 = arith.subf %150, %159 : vector<8x32xf32>
    %161 = arith.mulf %160, %160 : vector<8x32xf32>
    %cst_59 = arith.constant dense<0.000000e+00> : vector<8xf32>
    %162 = vector.multi_reduction <add>, %161, %cst_59 [1] : vector<8x32xf32> to vector<8xf32>
    %163 = vector.shape_cast %162 : vector<8xf32> to vector<8x1xf32>
    %cst_60 = arith.constant 3.200000e+01 : f32
    %164 = vector.broadcast %cst_60 : f32 to vector<8x1xf32>
    %165 = arith.divf %163, %164 : vector<8x1xf32>
    %166 = vector.broadcast %158 : vector<8x1xf32> to vector<8x32xf32>
    %167 = arith.subf %150, %166 : vector<8x32xf32>
    %cst_61 = arith.constant 9.99999996E-13 : f32
    %168 = vector.broadcast %cst_61 : f32 to vector<8x1xf32>
    %169 = arith.addf %165, %168 : vector<8x1xf32>
    %170 = math.rsqrt %169 : vector<8x1xf32>
    %171 = vector.broadcast %170 : vector<8x1xf32> to vector<8x32xf32>
    %172 = arith.mulf %167, %171 : vector<8x32xf32>
    %173 = vector.shape_cast %152 : vector<32xf32> to vector<1x32xf32>
    %174 = vector.broadcast %173 : vector<1x32xf32> to vector<8x32xf32>
    %175 = arith.mulf %172, %174 : vector<8x32xf32>
    %176 = vector.shape_cast %154 : vector<32xf32> to vector<1x32xf32>
    %177 = vector.broadcast %176 : vector<1x32xf32> to vector<8x32xf32>
    %178 = arith.addf %175, %177 : vector<8x32xf32>
    %179 = arith.truncf %178 : vector<8x32xf32> to vector<8x32xbf16>
    %c1_62 = arith.constant 1 : index
    %c0_63 = arith.constant 0 : index
    %c0_64 = arith.constant 0 : index
    %180 = vector.load %arg4[%c1_62, %c0_63, %c0_64] : memref<2x32x96xbf16, #tpu.memory_space<vmem>>, vector<1x32x96xbf16>
    %181 = vector.shape_cast %180 : vector<1x32x96xbf16> to vector<32x96xbf16>
    %cst_65 = arith.constant dense<0.000000e+00> : vector<8x96xf32>
    %182 = tpu.matmul %179, %181, %cst_65 {dimension_numbers = #tpu.dot_dimension_numbers<[1], [0], [0], [1], [0, 0, 1, 1], [], []>} : vector<8x32xbf16>, vector<32x96xbf16>, vector<8x96xf32> -> vector<8x96xf32>
    %c14 = arith.constant 14 : index
    %c0_66 = arith.constant 0 : index
    %183 = vector.load %arg3[%c14, %c0_66] : memref<19x128xf32, #tpu.memory_space<vmem>>, vector<1x96xf32>
    %184 = vector.shape_cast %183 : vector<1x96xf32> to vector<96xf32>
    %185 = vector.shape_cast %184 : vector<96xf32> to vector<1x96xf32>
    %186 = vector.broadcast %185 : vector<1x96xf32> to vector<8x96xf32>
    %187 = arith.addf %182, %186 : vector<8x96xf32>
    %188 = vector.extract_strided_slice %187 {offsets = [0, 0], sizes = [8, 16], strides = [1, 1]} : vector<8x96xf32> to vector<8x16xf32>
    %189 = arith.truncf %188 : vector<8x16xf32> to vector<8x16xbf16>
    %190 = vector.extract_strided_slice %187 {offsets = [0, 32], sizes = [8, 16], strides = [1, 1]} : vector<8x96xf32> to vector<8x16xf32>
    %191 = arith.truncf %190 : vector<8x16xf32> to vector<8x16xbf16>
    %192 = vector.extract_strided_slice %187 {offsets = [0, 64], sizes = [8, 16], strides = [1, 1]} : vector<8x96xf32> to vector<8x16xf32>
    %193 = arith.truncf %192 : vector<8x16xf32> to vector<8x16xbf16>
    "tpu.trace_start"() <{level = 10 : i32, message = "qd,kd->qk"}> : () -> ()
    %cst_67 = arith.constant dense<0.000000e+00> : vector<8x8xf32>
    %194 = tpu.matmul %189, %191, %cst_67 {dimension_numbers = #tpu.dot_dimension_numbers<[1], [1], [0], [0], [0, 0, 1, 0], [], []>} : vector<8x16xbf16>, vector<8x16xbf16>, vector<8x8xf32> -> vector<8x8xf32>
    "tpu.trace_stop"() : () -> ()
    %195 = arith.addf %194, %33 : vector<8x8xf32>
    %cst_68 = arith.constant dense<0xFF800000> : vector<8xf32>
    %196 = vector.multi_reduction <maximumf>, %195, %cst_68 [1] : vector<8x8xf32> to vector<8xf32>
    %197 = vector.shape_cast %196 : vector<8xf32> to vector<8x1xf32>
    %198 = vector.broadcast %197 : vector<8x1xf32> to vector<8x8xf32>
    %199 = arith.subf %195, %198 : vector<8x8xf32>
    %200 = math.exp %199 : vector<8x8xf32>
    %cst_69 = arith.constant dense<0.000000e+00> : vector<8xf32>
    %201 = vector.multi_reduction <add>, %200, %cst_69 [1] : vector<8x8xf32> to vector<8xf32>
    %202 = vector.shape_cast %201 : vector<8xf32> to vector<8x1xf32>
    %203 = tpu.reciprocal %202 {approx = true} : vector<8x1xf32> -> vector<8x1xf32>
    %204 = vector.broadcast %203 : vector<8x1xf32> to vector<8x8xf32>
    %205 = arith.mulf %200, %204 : vector<8x8xf32>
    %206 = arith.truncf %205 : vector<8x8xf32> to vector<8x8xbf16>
    %cst_70 = arith.constant dense<0.000000e+00> : vector<8x16xf32>
    %207 = tpu.matmul %206, %193, %cst_70 {dimension_numbers = #tpu.dot_dimension_numbers<[1], [0], [0], [1], [0, 0, 1, 1], [], []>} : vector<8x8xbf16>, vector<8x16xbf16>, vector<8x16xf32> -> vector<8x16xf32>
    %c0_71 = arith.constant 0 : index
    %c0_72 = arith.constant 0 : index
    %208 = vector.load %arg10[%c0_71, %c0_72] : memref<8x32xf32, #tpu.memory_space<vmem>>, vector<8x16xf32>
    tpu.vector_store %arg10[%c0_71, %c0_72], %207 {strides = array<i32>} : memref<8x32xf32, #tpu.memory_space<vmem>>, vector<8x16xf32>,
    %209 = vector.extract_strided_slice %187 {offsets = [0, 16], sizes = [8, 16], strides = [1, 1]} : vector<8x96xf32> to vector<8x16xf32>
    %210 = arith.truncf %209 : vector<8x16xf32> to vector<8x16xbf16>
    %211 = vector.extract_strided_slice %187 {offsets = [0, 48], sizes = [8, 16], strides = [1, 1]} : vector<8x96xf32> to vector<8x16xf32>
    %212 = arith.truncf %211 : vector<8x16xf32> to vector<8x16xbf16>
    %213 = vector.extract_strided_slice %187 {offsets = [0, 80], sizes = [8, 16], strides = [1, 1]} : vector<8x96xf32> to vector<8x16xf32>
    %214 = arith.truncf %213 : vector<8x16xf32> to vector<8x16xbf16>
    "tpu.trace_start"() <{level = 10 : i32, message = "qd,kd->qk"}> : () -> ()
    %cst_73 = arith.constant dense<0.000000e+00> : vector<8x8xf32>
    %215 = tpu.matmul %210, %212, %cst_73 {dimension_numbers = #tpu.dot_dimension_numbers<[1], [1], [0], [0], [0, 0, 1, 0], [], []>} : vector<8x16xbf16>, vector<8x16xbf16>, vector<8x8xf32> -> vector<8x8xf32>
    "tpu.trace_stop"() : () -> ()
    %216 = arith.addf %215, %33 : vector<8x8xf32>
    %cst_74 = arith.constant dense<0xFF800000> : vector<8xf32>
    %217 = vector.multi_reduction <maximumf>, %216, %cst_74 [1] : vector<8x8xf32> to vector<8xf32>
    %218 = vector.shape_cast %217 : vector<8xf32> to vector<8x1xf32>
    %219 = vector.broadcast %218 : vector<8x1xf32> to vector<8x8xf32>
    %220 = arith.subf %216, %219 : vector<8x8xf32>
    %221 = math.exp %220 : vector<8x8xf32>
    %cst_75 = arith.constant dense<0.000000e+00> : vector<8xf32>
    %222 = vector.multi_reduction <add>, %221, %cst_75 [1] : vector<8x8xf32> to vector<8xf32>
    %223 = vector.shape_cast %222 : vector<8xf32> to vector<8x1xf32>
    %224 = tpu.reciprocal %223 {approx = true} : vector<8x1xf32> -> vector<8x1xf32>
    %225 = vector.broadcast %224 : vector<8x1xf32> to vector<8x8xf32>
    %226 = arith.mulf %221, %225 : vector<8x8xf32>
    %227 = arith.truncf %226 : vector<8x8xf32> to vector<8x8xbf16>
    %cst_76 = arith.constant dense<0.000000e+00> : vector<8x16xf32>
    %228 = tpu.matmul %227, %214, %cst_76 {dimension_numbers = #tpu.dot_dimension_numbers<[1], [0], [0], [1], [0, 0, 1, 1], [], []>} : vector<8x8xbf16>, vector<8x16xbf16>, vector<8x16xf32> -> vector<8x16xf32>
    %c0_77 = arith.constant 0 : index
    %c16_78 = arith.constant 16 : index
    %229 = vector.load %arg10[%c0_77, %c16_78] : memref<8x32xf32, #tpu.memory_space<vmem>>, vector<8x16xf32>
    tpu.vector_store %arg10[%c0_77, %c16_78], %228 {strides = array<i32>} : memref<8x32xf32, #tpu.memory_space<vmem>>, vector<8x16xf32>,
    %c0_79 = arith.constant 0 : index
    %c0_80 = arith.constant 0 : index
    %230 = vector.load %arg10[%c0_79, %c0_80] : memref<8x32xf32, #tpu.memory_space<vmem>>, vector<8x32xf32>
    %231 = arith.truncf %230 : vector<8x32xf32> to vector<8x32xbf16>
    %c1_81 = arith.constant 1 : index
    %c0_82 = arith.constant 0 : index
    %c0_83 = arith.constant 0 : index
    %232 = vector.load %arg5[%c1_81, %c0_82, %c0_83] : memref<2x32x32xbf16, #tpu.memory_space<vmem>>, vector<1x32x32xbf16>
    %233 = vector.shape_cast %232 : vector<1x32x32xbf16> to vector<32x32xbf16>
    %cst_84 = arith.constant dense<0.000000e+00> : vector<8x32xf32>
    %234 = tpu.matmul %231, %233, %cst_84 {dimension_numbers = #tpu.dot_dimension_numbers<[1], [0], [0], [1], [0, 0, 1, 1], [], []>} : vector<8x32xbf16>, vector<32x32xbf16>, vector<8x32xf32> -> vector<8x32xf32>
    %c15 = arith.constant 15 : index
    %c0_85 = arith.constant 0 : index
    %235 = vector.load %arg3[%c15, %c0_85] : memref<19x128xf32, #tpu.memory_space<vmem>>, vector<1x32xf32>
    %236 = vector.shape_cast %235 : vector<1x32xf32> to vector<32xf32>
    %237 = vector.shape_cast %236 : vector<32xf32> to vector<1x32xf32>
    %238 = vector.broadcast %237 : vector<1x32xf32> to vector<8x32xf32>
    %239 = arith.addf %234, %238 : vector<8x32xf32>
    %240 = arith.addf %178, %239 : vector<8x32xf32>
    %c10 = arith.constant 10 : index
    %c0_86 = arith.constant 0 : index
    %241 = vector.load %arg3[%c10, %c0_86] : memref<19x128xf32, #tpu.memory_space<vmem>>, vector<1x32xf32>
    %242 = vector.shape_cast %241 : vector<1x32xf32> to vector<32xf32>
    %c11 = arith.constant 11 : index
    %c0_87 = arith.constant 0 : index
    %243 = vector.load %arg3[%c11, %c0_87] : memref<19x128xf32, #tpu.memory_space<vmem>>, vector<1x32xf32>
    %244 = vector.shape_cast %243 : vector<1x32xf32> to vector<32xf32>
    %cst_88 = arith.constant dense<0.000000e+00> : vector<8xf32>
    %245 = vector.multi_reduction <add>, %240, %cst_88 [1] : vector<8x32xf32> to vector<8xf32>
    %246 = vector.shape_cast %245 : vector<8xf32> to vector<8x1xf32>
    %cst_89 = arith.constant 3.200000e+01 : f32
    %247 = vector.broadcast %cst_89 : f32 to vector<8x1xf32>
    %248 = arith.divf %246, %247 : vector<8x1xf32>
    %249 = vector.broadcast %248 : vector<8x1xf32> to vector<8x32xf32>
    %250 = arith.subf %240, %249 : vector<8x32xf32>
    %251 = arith.mulf %250, %250 : vector<8x32xf32>
    %cst_90 = arith.constant dense<0.000000e+00> : vector<8xf32>
    %252 = vector.multi_reduction <add>, %251, %cst_90 [1] : vector<8x32xf32> to vector<8xf32>
    %253 = vector.shape_cast %252 : vector<8xf32> to vector<8x1xf32>
    %cst_91 = arith.constant 3.200000e+01 : f32
    %254 = vector.broadcast %cst_91 : f32 to vector<8x1xf32>
    %255 = arith.divf %253, %254 : vector<8x1xf32>
    %256 = vector.broadcast %248 : vector<8x1xf32> to vector<8x32xf32>
    %257 = arith.subf %240, %256 : vector<8x32xf32>
    %cst_92 = arith.constant 9.99999996E-13 : f32
    %258 = vector.broadcast %cst_92 : f32 to vector<8x1xf32>
    %259 = arith.addf %255, %258 : vector<8x1xf32>
    %260 = math.rsqrt %259 : vector<8x1xf32>
    %261 = vector.broadcast %260 : vector<8x1xf32> to vector<8x32xf32>
    %262 = arith.mulf %257, %261 : vector<8x32xf32>
    %263 = vector.shape_cast %242 : vector<32xf32> to vector<1x32xf32>
    %264 = vector.broadcast %263 : vector<1x32xf32> to vector<8x32xf32>
    %265 = arith.mulf %262, %264 : vector<8x32xf32>
    %266 = vector.shape_cast %244 : vector<32xf32> to vector<1x32xf32>
    %267 = vector.broadcast %266 : vector<1x32xf32> to vector<8x32xf32>
    %268 = arith.addf %265, %267 : vector<8x32xf32>
    %269 = arith.truncf %268 : vector<8x32xf32> to vector<8x32xbf16>
    %c1_93 = arith.constant 1 : index
    %c0_94 = arith.constant 0 : index
    %c0_95 = arith.constant 0 : index
    %270 = vector.load %arg6[%c1_93, %c0_94, %c0_95] : memref<2x32x64xbf16, #tpu.memory_space<vmem>>, vector<1x32x64xbf16>
    %271 = vector.shape_cast %270 : vector<1x32x64xbf16> to vector<32x64xbf16>
    %cst_96 = arith.constant dense<0.000000e+00> : vector<8x64xf32>
    %272 = tpu.matmul %269, %271, %cst_96 {dimension_numbers = #tpu.dot_dimension_numbers<[1], [0], [0], [1], [0, 0, 1, 1], [], []>} : vector<8x32xbf16>, vector<32x64xbf16>, vector<8x64xf32> -> vector<8x64xf32>
    %c16_97 = arith.constant 16 : index
    %c0_98 = arith.constant 0 : index
    %273 = vector.load %arg3[%c16_97, %c0_98] : memref<19x128xf32, #tpu.memory_space<vmem>>, vector<1x64xf32>
    %274 = vector.shape_cast %273 : vector<1x64xf32> to vector<64xf32>
    %275 = vector.shape_cast %274 : vector<64xf32> to vector<1x64xf32>
    %276 = vector.broadcast %275 : vector<1x64xf32> to vector<8x64xf32>
    %277 = arith.addf %272, %276 : vector<8x64xf32>
    %cst_99 = arith.constant 5.000000e-01 : f32
    %278 = vector.broadcast %cst_99 : f32 to vector<8x64xf32>
    %279 = arith.mulf %278, %277 : vector<8x64xf32>
    %cst_100 = arith.constant 0.707106769 : f32
    %280 = vector.broadcast %cst_100 : f32 to vector<8x64xf32>
    %281 = arith.mulf %277, %280 : vector<8x64xf32>
    %282 = math.erf %281 : vector<8x64xf32>
    %cst_101 = arith.constant 1.000000e+00 : f32
    %283 = vector.broadcast %cst_101 : f32 to vector<8x64xf32>
    %284 = arith.addf %283, %282 : vector<8x64xf32>
    %285 = arith.mulf %279, %284 : vector<8x64xf32>
    %286 = arith.truncf %285 : vector<8x64xf32> to vector<8x64xbf16>
    %c1_102 = arith.constant 1 : index
    %c0_103 = arith.constant 0 : index
    %c0_104 = arith.constant 0 : index
    %287 = vector.load %arg7[%c1_102, %c0_103, %c0_104] : memref<2x64x32xbf16, #tpu.memory_space<vmem>>, vector<1x64x32xbf16>
    %288 = vector.shape_cast %287 : vector<1x64x32xbf16> to vector<64x32xbf16>
    %cst_105 = arith.constant dense<0.000000e+00> : vector<8x32xf32>
    %289 = tpu.matmul %286, %288, %cst_105 {dimension_numbers = #tpu.dot_dimension_numbers<[1], [0], [0], [1], [0, 0, 1, 1], [], []>} : vector<8x64xbf16>, vector<64x32xbf16>, vector<8x32xf32> -> vector<8x32xf32>
    %c17 = arith.constant 17 : index
    %c0_106 = arith.constant 0 : index
    %290 = vector.load %arg3[%c17, %c0_106] : memref<19x128xf32, #tpu.memory_space<vmem>>, vector<1x32xf32>
    %291 = vector.shape_cast %290 : vector<1x32xf32> to vector<32xf32>
    %292 = vector.shape_cast %291 : vector<32xf32> to vector<1x32xf32>
    %293 = vector.broadcast %292 : vector<1x32xf32> to vector<8x32xf32>
    %294 = arith.addf %289, %293 : vector<8x32xf32>
    %295 = arith.addf %268, %294 : vector<8x32xf32>
    %c12 = arith.constant 12 : index
    %c0_107 = arith.constant 0 : index
    %296 = vector.load %arg3[%c12, %c0_107] : memref<19x128xf32, #tpu.memory_space<vmem>>, vector<1x32xf32>
    %297 = vector.shape_cast %296 : vector<1x32xf32> to vector<32xf32>
    %c13 = arith.constant 13 : index
    %c0_108 = arith.constant 0 : index
    %298 = vector.load %arg3[%c13, %c0_108] : memref<19x128xf32, #tpu.memory_space<vmem>>, vector<1x32xf32>
    %299 = vector.shape_cast %298 : vector<1x32xf32> to vector<32xf32>
    %cst_109 = arith.constant dense<0.000000e+00> : vector<8xf32>
    %300 = vector.multi_reduction <add>, %295, %cst_109 [1] : vector<8x32xf32> to vector<8xf32>
    %301 = vector.shape_cast %300 : vector<8xf32> to vector<8x1xf32>
    %cst_110 = arith.constant 3.200000e+01 : f32
    %302 = vector.broadcast %cst_110 : f32 to vector<8x1xf32>
    %303 = arith.divf %301, %302 : vector<8x1xf32>
    %304 = vector.broadcast %303 : vector<8x1xf32> to vector<8x32xf32>
    %305 = arith.subf %295, %304 : vector<8x32xf32>
    %306 = arith.mulf %305, %305 : vector<8x32xf32>
    %cst_111 = arith.constant dense<0.000000e+00> : vector<8xf32>
    %307 = vector.multi_reduction <add>, %306, %cst_111 [1] : vector<8x32xf32> to vector<8xf32>
    %308 = vector.shape_cast %307 : vector<8xf32> to vector<8x1xf32>
    %cst_112 = arith.constant 3.200000e+01 : f32
    %309 = vector.broadcast %cst_112 : f32 to vector<8x1xf32>
    %310 = arith.divf %308, %309 : vector<8x1xf32>
    %311 = vector.broadcast %303 : vector<8x1xf32> to vector<8x32xf32>
    %312 = arith.subf %295, %311 : vector<8x32xf32>
    %cst_113 = arith.constant 9.99999996E-13 : f32
    %313 = vector.broadcast %cst_113 : f32 to vector<8x1xf32>
    %314 = arith.addf %310, %313 : vector<8x1xf32>
    %315 = math.rsqrt %314 : vector<8x1xf32>
    %316 = vector.broadcast %315 : vector<8x1xf32> to vector<8x32xf32>
    %317 = arith.mulf %312, %316 : vector<8x32xf32>
    %318 = vector.shape_cast %297 : vector<32xf32> to vector<1x32xf32>
    %319 = vector.broadcast %318 : vector<1x32xf32> to vector<8x32xf32>
    %320 = arith.mulf %317, %319 : vector<8x32xf32>
    %321 = vector.shape_cast %299 : vector<32xf32> to vector<1x32xf32>
    %322 = vector.broadcast %321 : vector<1x32xf32> to vector<8x32xf32>
    %323 = arith.addf %320, %322 : vector<8x32xf32>
    %324 = arith.truncf %323 : vector<8x32xf32> to vector<8x32xbf16>
    %c0_114 = arith.constant 0 : index
    %c0_115 = arith.constant 0 : index
    %325 = vector.load %arg8[%c0_114, %c0_115] : memref<32x128xbf16, #tpu.memory_space<vmem>>, vector<32x128xbf16>
    %cst_116 = arith.constant dense<0.000000e+00> : vector<8x128xf32>
    %326 = tpu.matmul %324, %325, %cst_116 {dimension_numbers = #tpu.dot_dimension_numbers<[1], [0], [0], [1], [0, 0, 1, 1], [], []>} : vector<8x32xbf16>, vector<32x128xbf16>, vector<8x128xf32> -> vector<8x128xf32>
    %c18 = arith.constant 18 : index
    %c0_117 = arith.constant 0 : index
    %327 = vector.load %arg3[%c18, %c0_117] : memref<19x128xf32, #tpu.memory_space<vmem>>, vector<1x128xf32>
    %328 = vector.shape_cast %327 : vector<1x128xf32> to vector<128xf32>
    %329 = vector.shape_cast %328 : vector<128xf32> to vector<1x128xf32>
    %330 = vector.broadcast %329 : vector<1x128xf32> to vector<8x128xf32>
    %331 = arith.addf %326, %330 : vector<8x128xf32>
    %cst_118 = arith.constant dense<0xFF800000> : vector<8xf32>
    %332 = vector.multi_reduction <maximumf>, %331, %cst_118 [1] : vector<8x128xf32> to vector<8xf32>
    %333 = vector.shape_cast %332 : vector<8xf32> to vector<8x1xf32>
    %334 = vector.broadcast %333 : vector<8x1xf32> to vector<8x128xf32>
    %335 = arith.subf %331, %334 : vector<8x128xf32>
    %336 = math.exp %335 : vector<8x128xf32>
    %cst_119 = arith.constant dense<0.000000e+00> : vector<8xf32>
    %337 = vector.multi_reduction <add>, %336, %cst_119 [1] : vector<8x128xf32> to vector<8xf32>
    %338 = vector.shape_cast %337 : vector<8xf32> to vector<8x1xf32>
    %339 = vector.broadcast %338 : vector<8x1xf32> to vector<8x128xf32>
    %340 = arith.divf %336, %339 : vector<8x128xf32>
    %c0_120 = arith.constant 0 : index
    %c0_121 = arith.constant 0 : index
    %341 = vector.load %arg9[%c0_120, %c0_121] : memref<8x128xf32, #tpu.memory_space<vmem>>, vector<8x128xf32>
    tpu.vector_store %arg9[%c0_120, %c0_121], %340 {strides = array<i32>} : memref<8x128xf32, #tpu.memory_space<vmem>>, vector<8x128xf32>,
    return
  }
  func.func @transform_0(%arg0: i32) -> (i32, i32, i32) {
    %c0_i32 = arith.constant 0 : i32
    %c0_i32_0 = arith.constant 0 : i32
    %c0_i32_1 = arith.constant 0 : i32
    return %arg0, %c0_i32, %c0_i32_0 : i32, i32, i32
  }
  func.func @transform_1(%arg0: i32) -> (i32, i32, i32) {
    %c0_i32 = arith.constant 0 : i32
    %c0_i32_0 = arith.constant 0 : i32
    %c0_i32_1 = arith.constant 0 : i32
    return %arg0, %c0_i32, %c0_i32_0 : i32, i32, i32
  }
  func.func @transform_2(%arg0: i32) -> (i32, i32) {
    %c0_i32 = arith.constant 0 : i32
    %c0_i32_0 = arith.constant 0 : i32
    %c0_i32_1 = arith.constant 0 : i32
    return %c0_i32, %c0_i32_0 : i32, i32
  }
  func.func @transform_3(%arg0: i32) -> (i32, i32, i32) {
    %c0_i32 = arith.constant 0 : i32
    %c0_i32_0 = arith.constant 0 : i32
    %c0_i32_1 = arith.constant 0 : i32
    %c0_i32_2 = arith.constant 0 : i32
    return %c0_i32, %c0_i32_0, %c0_i32_1 : i32, i32, i32
  }
  func.func @transform_4(%arg0: i32) -> (i32, i32, i32) {
    %c0_i32 = arith.constant 0 : i32
    %c0_i32_0 = arith.constant 0 : i32
    %c0_i32_1 = arith.constant 0 : i32
    %c0_i32_2 = arith.constant 0 : i32
    return %c0_i32, %c0_i32_0, %c0_i32_1 : i32, i32, i32
  }
  func.func @transform_5(%arg0: i32) -> (i32, i32, i32) {
    %c0_i32 = arith.constant 0 : i32
    %c0_i32_0 = arith.constant 0 : i32
    %c0_i32_1 = arith.constant 0 : i32
    %c0_i32_2 = arith.constant 0 : i32
    return %c0_i32, %c0_i32_0, %c0_i32_1 : i32, i32, i32
  }
  func.func @transform_6(%arg0: i32) -> (i32, i32, i32) {
    %c0_i32 = arith.constant 0 : i32
    %c0_i32_0 = arith.constant 0 : i32
    %c0_i32_1 = arith.constant 0 : i32
    %c0_i32_2 = arith.constant 0 : i32
    return %c0_i32, %c0_i32_0, %c0_i32_1 : i32, i32, i32
  }
  func.func @transform_7(%arg0: i32) -> (i32, i32) {
    %c0_i32 = arith.constant 0 : i32
    %c0_i32_0 = arith.constant 0 : i32
    %c0_i32_1 = arith.constant 0 : i32
    return %c0_i32, %c0_i32_0 : i32, i32
  }
  func.func @transform_8(%arg0: i32) -> (i32, i32) {
    %c0_i32 = arith.constant 0 : i32
    %c0_i32_0 = arith.constant 0 : i32
    return %arg0, %c0_i32 : i32, i32
  }
}

</mosaic_0001>

<llo_original>
// kernel: forward.1
$region0: #{forward.1}
  #allocation0 [shape = 'u32[]', space=smem, size = 0x4, offset = 0x4, fixed_abs, tag = 'smem constant byte address 0x4 - core index']
  #allocation1 [shape = 'u32[144,128]{1,0:T(1,128)}', space=vmem, size = 0x12000, scoped, tag = 'internal scratch']
  #allocation2 [shape = 'f32[8,32]{1,0:T(8,128)}', space=vmem, size = 0x1000, scoped, tag = 'scratch operand']
  %s0 = inlined_call_operand.vmem [shape: f32[2,8,32], index: 0, kind: input, shape index: {}]
  %s1 = inlined_call_operand.vmem [shape: f32[2,1,8], index: 1, kind: input, shape index: {}]
  %s2 = inlined_call_operand.vmem [shape: f32[19,128], index: 2, kind: input, shape index: {}]
  %s3 = inlined_call_operand.vmem [shape: bf16[2,32,96], index: 3, kind: input, shape index: {}]
  %s4 = inlined_call_operand.vmem [shape: bf16[2,32,32], index: 4, kind: input, shape index: {}]
  %s5 = inlined_call_operand.vmem [shape: bf16[2,32,64], index: 5, kind: input, shape index: {}]
  %s6 = inlined_call_operand.vmem [shape: bf16[2,64,32], index: 6, kind: input, shape index: {}]
  %s7 = inlined_call_operand.vmem [shape: bf16[32,128], index: 7, kind: input, shape index: {}]
  %s8 = inlined_call_operand.vmem [shape: f32[16,128], index: 8, kind: output, shape index: {}]
  %s9 = sld [smem:[#allocation0]]
  $region65: #{forward.1} parent=0
    _
  %s11 = ssub.s32 1, %s9
  %s12 = scalar_select 0, %s11, %s9
  loop: start=0, step=1, limit=4
  $region2: #{forward.1} parent=0 // loop_pre_header
    _
  $region3: #{forward.1} parent=0 // loop_header
    %s14 = sphi 0, %s18
    %p15 = scmp.ge.s32.totalorder %s14, 4
    %s24 = sphi 0, %s26
    %s27 = sphi 0, %s24
    %s28 = sphi 0, %s27
    %s44 = sphi 0, %s28
    %s50 = sphi 0, %s52
    %s53 = sphi 0, %s50
    %s54 = sphi 0, %s53
    %s70 = sphi 0, %s54
    %s74 = sphi 0, %s74
    %s76 = sphi 0, %s74
    %s77 = sphi 0, %s76
    %s91 = sphi 0, %s77
    %s95 = sphi 0, %s95
    %s97 = sphi 0, %s95
    %s98 = sphi 0, %s97
    %s112 = sphi 0, %s98
    %s116 = sphi 0, %s116
    %s118 = sphi 0, %s116
    %s119 = sphi 0, %s118
    %s133 = sphi 0, %s119
    %s137 = sphi 0, %s137
    %s139 = sphi 0, %s137
    %s140 = sphi 0, %s139
    %s154 = sphi 0, %s140
    %s158 = sphi 0, %s158
    %s160 = sphi 0, %s158
    %s161 = sphi 0, %s160
    %s175 = sphi 0, %s161
    %s179 = sphi 0, %s179
    %s181 = sphi 0, %s179
    %s182 = sphi 0, %s181
    %s196 = sphi 0, %s182
    %s202 = sphi 0, %s204
    %s205 = sphi 0, %s202
    %s206 = sphi 0, %s205
    %s222 = sphi 0, %s206
  $region4: #{forward.1} parent=0 // loop_header_branch
    %17 = sbr.rel (%p15) target = $region8
  $region5: #{forward.1} parent=0 // loop_body
    %s19 = ssub.s32 %s14, 1
    %s20 = ssub.s32 %s14, 2
    %s21 = sadd.s32 %s14, 1
    %s22 = ssub.s32 %s14, %s21
    %p23 = scmp.eq.s32.totalorder %s22, 0
    %s25 = sadd.s32 %s24, 1
    %s26 = scalar_select %p23, %s24, %s25
    %p29 = pneg %p23
    %p30 = scmp.eq.s32.totalorder %s14, 1
    %p31 = por %p29, %p30
    %p32 = scmp.ne.s32.totalorder %s24, %s27
    %p33 = scmp.eq.s32.totalorder %s14, 0
    %p34 = por %p32, %p33
    %p35 = scmp.ne.s32.totalorder %s24, %s27
    %p36 = scmp.eq.s32.totalorder %s19, 1
    %p37 = por %p35, %p36
    %p38 = scmp.ne.s32.totalorder %s27, %s28
    %p39 = scmp.eq.s32.totalorder %s19, 0
    %p40 = por %p38, %p39
    %p41 = scmp.ne.s32.totalorder %s27, %s28
    %p42 = scmp.eq.s32.totalorder %s20, 1
    %p43 = por %p41, %p42
    %p45 = scmp.ne.s32.totalorder %s28, %s44
    %p46 = scmp.eq.s32.totalorder %s20, 0
    %p47 = por %p45, %p46
    %s48 = ssub.s32 %s14, %s21
    %p49 = scmp.eq.s32.totalorder %s48, 0
    %s51 = sadd.s32 %s50, 1
    %s52 = scalar_select %p49, %s50, %s51
    %p55 = pneg %p49
    %p56 = scmp.eq.s32.totalorder %s14, 1
    %p57 = por %p55, %p56
    %p58 = scmp.ne.s32.totalorder %s50, %s53
    %p59 = scmp.eq.s32.totalorder %s14, 0
    %p60 = por %p58, %p59
    %p61 = scmp.ne.s32.totalorder %s50, %s53
    %p62 = scmp.eq.s32.totalorder %s19, 1
    %p63 = por %p61, %p62
    %p64 = scmp.ne.s32.totalorder %s53, %s54
    %p65 = scmp.eq.s32.totalorder %s19, 0
    %p66 = por %p64, %p65
    %p67 = scmp.ne.s32.totalorder %s53, %s54
    %p68 = scmp.eq.s32.totalorder %s20, 1
    %p69 = por %p67, %p68
    %p71 = scmp.ne.s32.totalorder %s54, %s70
    %p72 = scmp.eq.s32.totalorder %s20, 0
    %p73 = por %p71, %p72
    %s75 = sadd.s32 %s74, 1
    %p78 = scmp.eq.s32.totalorder %s14, 1
    %p79 = scmp.ne.s32.totalorder %s74, %s76
    %p80 = scmp.eq.s32.totalorder %s14, 0
    %p81 = por %p79, %p80
    %p82 = scmp.ne.s32.totalorder %s74, %s76
    %p83 = scmp.eq.s32.totalorder %s19, 1
    %p84 = por %p82, %p83
    %p85 = scmp.ne.s32.totalorder %s76, %s77
    %p86 = scmp.eq.s32.totalorder %s19, 0
    %p87 = por %p85, %p86
    %p88 = scmp.ne.s32.totalorder %s76, %s77
    %p89 = scmp.eq.s32.totalorder %s20, 1
    %p90 = por %p88, %p89
    %p92 = scmp.ne.s32.totalorder %s77, %s91
    %p93 = scmp.eq.s32.totalorder %s20, 0
    %p94 = por %p92, %p93
    %s96 = sadd.s32 %s95, 1
    %p99 = scmp.eq.s32.totalorder %s14, 1
    %p100 = scmp.ne.s32.totalorder %s95, %s97
    %p101 = scmp.eq.s32.totalorder %s14, 0
    %p102 = por %p100, %p101
    %p103 = scmp.ne.s32.totalorder %s95, %s97
    %p104 = scmp.eq.s32.totalorder %s19, 1
    %p105 = por %p103, %p104
    %p106 = scmp.ne.s32.totalorder %s97, %s98
    %p107 = scmp.eq.s32.totalorder %s19, 0
    %p108 = por %p106, %p107
    %p109 = scmp.ne.s32.totalorder %s97, %s98
    %p110 = scmp.eq.s32.totalorder %s20, 1
    %p111 = por %p109, %p110
    %p113 = scmp.ne.s32.totalorder %s98, %s112
    %p114 = scmp.eq.s32.totalorder %s20, 0
    %p115 = por %p113, %p114
    %s117 = sadd.s32 %s116, 1
    %p120 = scmp.eq.s32.totalorder %s14, 1
    %p121 = scmp.ne.s32.totalorder %s116, %s118
    %p122 = scmp.eq.s32.totalorder %s14, 0
    %p123 = por %p121, %p122
    %p124 = scmp.ne.s32.totalorder %s116, %s118
    %p125 = scmp.eq.s32.totalorder %s19, 1
    %p126 = por %p124, %p125
    %p127 = scmp.ne.s32.totalorder %s118, %s119
    %p128 = scmp.eq.s32.totalorder %s19, 0
    %p129 = por %p127, %p128
    %p130 = scmp.ne.s32.totalorder %s118, %s119
    %p131 = scmp.eq.s32.totalorder %s20, 1
    %p132 = por %p130, %p131
    %p134 = scmp.ne.s32.totalorder %s119, %s133
    %p135 = scmp.eq.s32.totalorder %s20, 0
    %p136 = por %p134, %p135
    %s138 = sadd.s32 %s137, 1
    %p141 = scmp.eq.s32.totalorder %s14, 1
    %p142 = scmp.ne.s32.totalorder %s137, %s139
    %p143 = scmp.eq.s32.totalorder %s14, 0
    %p144 = por %p142, %p143
    %p145 = scmp.ne.s32.totalorder %s137, %s139
    %p146 = scmp.eq.s32.totalorder %s19, 1
    %p147 = por %p145, %p146
    %p148 = scmp.ne.s32.totalorder %s139, %s140
    %p149 = scmp.eq.s32.totalorder %s19, 0
    %p150 = por %p148, %p149
    %p151 = scmp.ne.s32.totalorder %s139, %s140
    %p152 = scmp.eq.s32.totalorder %s20, 1
    %p153 = por %p151, %p152
    %p155 = scmp.ne.s32.totalorder %s140, %s154
    %p156 = scmp.eq.s32.totalorder %s20, 0
    %p157 = por %p155, %p156
    %s159 = sadd.s32 %s158, 1
    %p162 = scmp.eq.s32.totalorder %s14, 1
    %p163 = scmp.ne.s32.totalorder %s158, %s160
    %p164 = scmp.eq.s32.totalorder %s14, 0
    %p165 = por %p163, %p164
    %p166 = scmp.ne.s32.totalorder %s158, %s160
    %p167 = scmp.eq.s32.totalorder %s19, 1
    %p168 = por %p166, %p167
    %p169 = scmp.ne.s32.totalorder %s160, %s161
    %p170 = scmp.eq.s32.totalorder %s19, 0
    %p171 = por %p169, %p170
    %p172 = scmp.ne.s32.totalorder %s160, %s161
    %p173 = scmp.eq.s32.totalorder %s20, 1
    %p174 = por %p172, %p173
    %p176 = scmp.ne.s32.totalorder %s161, %s175
    %p177 = scmp.eq.s32.totalorder %s20, 0
    %p178 = por %p176, %p177
    %s180 = sadd.s32 %s179, 1
    %p183 = scmp.eq.s32.totalorder %s14, 1
    %p184 = scmp.ne.s32.totalorder %s179, %s181
    %p185 = scmp.eq.s32.totalorder %s14, 0
    %p186 = por %p184, %p185
    %p187 = scmp.ne.s32.totalorder %s179, %s181
    %p188 = scmp.eq.s32.totalorder %s19, 1
    %p189 = por %p187, %p188
    %p190 = scmp.ne.s32.totalorder %s181, %s182
    %p191 = scmp.eq.s32.totalorder %s19, 0
    %p192 = por %p190, %p191
    %p193 = scmp.ne.s32.totalorder %s181, %s182
    %p194 = scmp.eq.s32.totalorder %s20, 1
    %p195 = por %p193, %p194
    %p197 = scmp.ne.s32.totalorder %s182, %s196
    %p198 = scmp.eq.s32.totalorder %s20, 0
    %p199 = por %p197, %p198
    %s200 = ssub.s32 %s14, %s21
    %p201 = scmp.eq.s32.totalorder %s200, 0
    %s203 = sadd.s32 %s202, 1
    %s204 = scalar_select %p201, %s202, %s203
    %p207 = pneg %p201
    %p208 = scmp.eq.s32.totalorder %s14, 1
    %p209 = por %p207, %p208
    %p210 = scmp.ne.s32.totalorder %s202, %s205
    %p211 = scmp.eq.s32.totalorder %s14, 0
    %p212 = por %p210, %p211
    %p213 = scmp.ne.s32.totalorder %s202, %s205
    %p214 = scmp.eq.s32.totalorder %s19, 1
    %p215 = por %p213, %p214
    %p216 = scmp.ne.s32.totalorder %s205, %s206
    %p217 = scmp.eq.s32.totalorder %s19, 0
    %p218 = por %p216, %p217
    %p219 = scmp.ne.s32.totalorder %s205, %s206
    %p220 = scmp.eq.s32.totalorder %s20, 1
    %p221 = por %p219, %p220
    %p223 = scmp.ne.s32.totalorder %s206, %s222
    %p224 = scmp.eq.s32.totalorder %s20, 0
    %p225 = por %p223, %p224
    %p226 = scmp.le.s32.totalorder 1, %s14
    %p227 = scmp.lt.s32.totalorder %s14, 3
    %p228 = pnand %p226, %p227
    %p229 = pneg %p228
    // Predicated region
    $region9: #{forward.1} parent=5 // pred_check
      _
    $region10: #{forward.1} parent=5 // pred_check_branch
      %231 = sbr.rel (%p228) target = $region12
    $region11: #{forward.1} parent=5 // pred_region
      %s232 = ssub.s32 %s14, 1
      // Predicated region
      $region13: #{forward.1} parent=11 // pred_check
        %p233 = pneg %p87
      $region14: #{forward.1} parent=11 // pred_check_branch
        %235 = sbr.rel (%p233) target = $region16
      $region15: #{forward.1} parent=11 // pred_region
        _
      $region16: #{forward.1} parent=11 // pred_fallthru
        _
      // Predicated region
      $region17: #{forward.1} parent=11 // pred_check
        %p236 = pneg %p108
      $region18: #{forward.1} parent=11 // pred_check_branch
        %238 = sbr.rel (%p236) target = $region20
      $region19: #{forward.1} parent=11 // pred_region
        _
      $region20: #{forward.1} parent=11 // pred_fallthru
        _
      // Predicated region
      $region21: #{forward.1} parent=11 // pred_check
        %p239 = pneg %p129
      $region22: #{forward.1} parent=11 // pred_check_branch
        %241 = sbr.rel (%p239) target = $region24
      $region23: #{forward.1} parent=11 // pred_region
        _
      $region24: #{forward.1} parent=11 // pred_fallthru
        _
      // Predicated region
      $region25: #{forward.1} parent=11 // pred_check
        %p242 = pneg %p150
      $region26: #{forward.1} parent=11 // pred_check_branch
        %244 = sbr.rel (%p242) target = $region28
      $region27: #{forward.1} parent=11 // pred_region
        _
      $region28: #{forward.1} parent=11 // pred_fallthru
        _
      // Predicated region
      $region29: #{forward.1} parent=11 // pred_check
        %p245 = pneg %p171
      $region30: #{forward.1} parent=11 // pred_check_branch
        %247 = sbr.rel (%p245) target = $region32
      $region31: #{forward.1} parent=11 // pred_region
        _
      $region32: #{forward.1} parent=11 // pred_fallthru
        _
      // Predicated region
      $region33: #{forward.1} parent=11 // pred_check
        %p248 = pneg %p192
      $region34: #{forward.1} parent=11 // pred_check_branch
        %250 = sbr.rel (%p248) target = $region36
      $region35: #{forward.1} parent=11 // pred_region
        _
      $region36: #{forward.1} parent=11 // pred_fallthru
        _
    $region12: #{forward.1} parent=5 // pred_fallthru
      _
    %p251 = scmp.lt.s32.totalorder %s14, 2
    // Predicated region
    $region37: #{forward.1} parent=5 // pred_check
      %p252 = pneg %p251
    $region38: #{forward.1} parent=5 // pred_check_branch
      %254 = sbr.rel (%p252) target = $region40
    $region39: #{forward.1} parent=5 // pred_region
      // Predicated region
      $region41: #{forward.1} parent=39 // pred_check
        %p255 = pneg %p34
      $region42: #{forward.1} parent=39 // pred_check_branch
        %257 = sbr.rel (%p255) target = $region44
      $region43: #{forward.1} parent=39 // pred_region
        %p258 = scmp.lt.s32.totalorder %s14, 1
        %s259 = scalar_select %p258, %s14, 1
        %s260 = smul.addr %s259, 8
        %s261 = scalar_lea.vmem %s0, %s260
      $region44: #{forward.1} parent=39 // pred_fallthru
        _
      // Predicated region
      $region45: #{forward.1} parent=39 // pred_check
        %p262 = pneg %p60
      $region46: #{forward.1} parent=39 // pred_check_branch
        %264 = sbr.rel (%p262) target = $region48
      $region47: #{forward.1} parent=39 // pred_region
        %p265 = scmp.lt.s32.totalorder %s14, 1
        %s266 = scalar_select %p265, %s14, 1
        %s267 = scalar_lea.vmem %s1, %s266
      $region48: #{forward.1} parent=39 // pred_fallthru
        _
    $region40: #{forward.1} parent=5 // pred_fallthru
      _
    %p268 = scmp.le.s32.totalorder 1, %s14
    %p269 = scmp.lt.s32.totalorder %s14, 3
    %p270 = pnand %p268, %p269
    %p271 = pneg %p270
    // Predicated region
    $region49: #{forward.1} parent=5 // pred_check
      _
    $region50: #{forward.1} parent=5 // pred_check_branch
      %273 = sbr.rel (%p270) target = $region52
    $region51: #{forward.1} parent=5 // pred_region
      %s274 = ssub.s32 %s14, 1
      %p275 = scmp.lt.s32.totalorder %s19, 1
      %s276 = scalar_select %p275, %s19, 1
      %s277 = smul.addr %s276, 8
      %s278 = scalar_lea.vmem %s0, %s277
      %p279 = pneg %p40
      %p280 = pneg %p37
      %p281 = scmp.lt.s32.totalorder %s19, 1
      %s282 = scalar_select %p281, %s19, 1
      %s283 = scalar_lea.vmem %s1, %s282
      %p284 = pneg %p66
      %p285 = pneg %p63
      %p286 = pneg %p87
      %p287 = pneg %p84
      %p288 = pneg %p108
      %p289 = pneg %p105
      %p290 = pneg %p129
      %p291 = pneg %p126
      %p292 = pneg %p150
      %p293 = pneg %p147
      %p294 = pneg %p171
      %p295 = pneg %p168
      %p296 = pneg %p192
      %p297 = pneg %p189
      %p298 = pneg %p218
      %p299 = pneg %p215
      %p300 = scmp.lt.s32.totalorder %s19, 1
      %s301 = scalar_select %p300, %s19, 1
      %s302 = smul.addr %s301, 8
      %s303 = scalar_lea.vmem %s8, %s302
      %p304 = scmp.lt.s32.totalorder %s19, 1
      %s305 = scalar_select %p304, %s19, 1
      %s306 = smul.addr %s305, 8
      %s307 = scalar_lea.vmem %s0, %s306
      %p308 = scmp.lt.s32.totalorder %s19, 1
      %s309 = scalar_select %p308, %s19, 1
      %s310 = scalar_lea.vmem %s1, %s309
      %p311 = scmp.lt.s32.totalorder %s19, 1
      %s312 = scalar_select %p311, %s19, 1
      %s313 = smul.addr %s312, 8
      %s314 = scalar_lea.vmem %s8, %s313
      %v316 = vld [vmem:[%s307] sm:$0xff]
      %v317 = vld [vmem:[%s2] sm:$0x1]
      %v318 = vld [vmem:[%s2 + $0x1] sm:$0x1]
      %vm319 = vcmask 261120
      %v320 = vsel %vm319, %v316, 0.0
      %321 = vadd.xlane.f32.xlu0 %v320
      %v322 = vpop.xlane.xlu0 %321
      %v323 = vrcp.pop 32.0
      %v324 = vmul.f32 %v322, %v323
      %v325 = vsub.f32 %v316, %v324
      %v326 = vmul.f32 %v325, %v325
      %v327 = vsel %vm319, %v326, 0.0
      %328 = vadd.xlane.f32.xlu0 %v327
      %v329 = vpop.xlane.xlu0 %328
      %v330 = vmul.f32 %v329, %v323
      %v331 = vadd.f32 %v330, 1e-12
      %v332 = vrsqrt.pop %v331
      %v333 = vmul.f32 %v325, %v332
      %v334 = vlaneseq
      %v335 = vshrl.u32 %v334, 7
      %v336 = vsub.s32 0, %v335
      %v337 = vrot.slane %v317, %v336
      %v338 = vmul.f32 %v333, %v337
      %v339 = vlaneseq
      %v340 = vshrl.u32 %v339, 7
      %v341 = vsub.s32 0, %v340
      %v342 = vrot.slane %v318, %v341
      %v343 = vadd.f32 %v338, %v342
      %v344 = vld [vmem:[%s310] sm:$0x1]
      %v346 = vlaneseq
      %v347 = vshrl.u32 %v346, 7
      %v348 = vsub.s32 0, %v347
      %v349 = vrot.slane %v344, %v348
      %v351 = vpack.c.bf16 %v343, %v343
      %v352 = vld [vmem:[%s3] sm:$0xf]
      %v353 = vld [vmem:[%s3 + $0x4] sm:$0xf]
      %v354 = vld [vmem:[%s3 + $0x8] sm:$0xf]
      %v355 = vld [vmem:[%s3 + $0xc] sm:$0xf]
      %v356 = vld [vmem:[%s2 + $0x6] sm:$0x1]
      %v357 = vlaneseq
      %v358 = vshrl.u32 %v357, 7
      %v359 = vsub.s32 0, %v358
      %v360 = vrot.slane %v356, %v359
      %v365 = vunpack.c.l.b16 %v352
      %v366 = vunpack.c.l.b16 %v353
      %v367 = vunpack.c.l.b16 %v354
      %v368 = vunpack.c.l.b16 %v355
      %v369 = vpack.c.b16 %v366, %v365
      %v370 = vpack.c.b16 %v368, %v367
      %v374 = vsel %vm319, %v351, 0
      %376 = vmatprep.subr.bf16.mxu0 0
      %377 = vmatpush1.bf16.msra.mxu0 %v369
      %378 = vmatprep.subr.bf16.mxu0 0
      %379 = vmatpush1.bf16.msra.mxu0 %v370
      %380 = vmatprep.subr.bf16.mxu0 0
      %381 = vmatpush1.bf16.msra.mxu0 0
      %382 = vmatprep.subr.bf16.mxu0 0
      %383 = vmatpush1.bf16.msra.mxu0 0
      %384 = vmatprep.subr.bf16.mxu0 0
      %385 = vmatpush1.bf16.msra.mxu0 0
      %386 = vmatprep.subr.bf16.mxu0 0
      %387 = vmatpush1.bf16.msra.mxu0 0
      %388 = vmatprep.subr.bf16.mxu0 0
      %389 = vmatpush1.bf16.msra.mxu0 0
      %390 = vmatprep.subr.bf16.mxu0 0
      %391 = vmatpush1.bf16.msra.mxu0 0
      %392 = vmatprep.subr.bf16.mxu0 0
      %393 = vmatpush1.bf16.msra.mxu0 0
      %394 = vmatprep.subr.bf16.mxu0 0
      %395 = vmatpush1.bf16.msra.mxu0 0
      %396 = vmatprep.subr.bf16.mxu0 0
      %397 = vmatpush1.bf16.msra.mxu0 0
      %398 = vmatprep.subr.bf16.mxu0 0
      %399 = vmatpush1.bf16.msra.mxu0 0
      %400 = vmatprep.subr.bf16.mxu0 0
      %401 = vmatpush1.bf16.msra.mxu0 0
      %402 = vmatprep.subr.bf16.mxu0 0
      %403 = vmatpush1.bf16.msra.mxu0 0
      %404 = vmatprep.subr.bf16.mxu0 0
      %405 = vmatpush1.bf16.msra.mxu0 0
      %406 = vmatprep.subr.bf16.mxu0 0
      %407 = vmatpush1.bf16.msra.mxu0 0
      %408 = vmatprep.mubr.bf16.mxu0 0
      %409 = vmatmul.mubr.bf16.gmra.mrb[0].mxu0 %v374
      %v410 = vpop.f32.mrb[0].mxu0
      %v411 = vadd.f32 %v360, %v410
      %v412 = vpop.f32.mrb[0].mxu0
      %v413 = vpop.f32.mrb[0].mxu0
      %v414 = vpop.f32.mrb[0].mxu0
      %415 = vdwg.mxu0
      %v416 = vpack.c.bf16 %v411, %v411
      %418 = vrot.lane.b32.xlu0 %v416, 96
      %v419 = vpop.permute.xlu0 %418
      %vm420 = vcmask 130048
      %v422 = vsel %vm420, %v416, 0
      %v425 = vsel %vm420, %v419, 0
      %427 = vmatprep.subr.bf16.mxu0 0
      %428 = vmatpush1.bf16.xpose.msra.mxu0 %v425
      %429 = vmatprep.subr.bf16.mxu0 0
      %430 = vmatpush1.bf16.xpose.msra.mxu0 0
      %431 = vmatprep.subr.bf16.mxu0 0
      %432 = vmatpush1.bf16.xpose.msra.mxu0 0
      %433 = vmatprep.subr.bf16.mxu0 0
      %434 = vmatpush1.bf16.xpose.msra.mxu0 0
      %435 = vmatprep.subr.bf16.mxu0 0
      %436 = vmatpush1.bf16.xpose.msra.mxu0 0
      %437 = vmatprep.subr.bf16.mxu0 0
      %438 = vmatpush1.bf16.xpose.msra.mxu0 0
      %439 = vmatprep.subr.bf16.mxu0 0
      %440 = vmatpush1.bf16.xpose.msra.mxu0 0
      %441 = vmatprep.subr.bf16.mxu0 0
      %442 = vmatpush1.bf16.xpose.msra.mxu0 0
      %443 = vmatprep.subr.bf16.mxu0 0
      %444 = vmatpush1.bf16.xpose.msra.mxu0 0
      %445 = vmatprep.subr.bf16.mxu0 0
      %446 = vmatpush1.bf16.xpose.msra.mxu0 0
      %447 = vmatprep.subr.bf16.mxu0 0
      %448 = vmatpush1.bf16.xpose.msra.mxu0 0
      %449 = vmatprep.subr.bf16.mxu0 0
      %450 = vmatpush1.bf16.xpose.msra.mxu0 0
      %451 = vmatprep.subr.bf16.mxu0 0
      %452 = vmatpush1.bf16.xpose.msra.mxu0 0
      %453 = vmatprep.subr.bf16.mxu0 0
      %454 = vmatpush1.bf16.xpose.msra.mxu0 0
      %455 = vmatprep.subr.bf16.mxu0 0
      %456 = vmatpush1.bf16.xpose.msra.mxu0 0
      %457 = vmatprep.subr.bf16.mxu0 0
      %458 = vmatpush1.bf16.xpose.msra.mxu0 0
      %459 = vmatprep.mubr.bf16.mxu0 0
      %460 = vmatmul.mubr.bf16.gmra.mrb[0].mxu0 %v422
      %v461 = vpop.f32.mrb[0].mxu0
      %v462 = vadd.f32 %v349, %v461
      %v463 = vpop.f32.mrb[0].mxu0
      %v464 = vpop.f32.mrb[0].mxu0
      %v465 = vpop.f32.mrb[0].mxu0
      %466 = vdwg.mxu0
      %vm467 = vcmask 64512
      %v468 = vsel %vm467, %v462, -inf
      %469 = vmax.xlane.f32.xlu0 %v468
      %v470 = vpop.xlane.xlu0 %469
      %v471 = vsub.f32 %v462, %v470
      %v472 = vmul.f32 %v471, 1.442695
      %v473 = vpow.pop %v472
      %v474 = vsel %vm467, %v473, 0.0
      %475 = vadd.xlane.f32.xlu0 %v474
      %v476 = vpop.xlane.xlu0 %475
      %v477 = vrcp.pop %v476
      %v478 = vmul.f32 %v473, %v477
      %v479 = vpack.c.bf16 %v478, %v478
      %480 = vrot.lane.b32.xlu0 %v416, 64
      %v481 = vpop.permute.xlu0 %480
      %v483 = vsel %vm467, %v479, 0
      %vm485 = vcmask 1043456
      %v487 = vsel %vm485, %v481, 0
      %489 = vmatprep.subr.bf16.mxu0 0
      %490 = vmatpush1.bf16.msra.mxu0 %v487
      %491 = vmatprep.subr.bf16.mxu0 0
      %492 = vmatpush1.bf16.msra.mxu0 0
      %493 = vmatprep.subr.bf16.mxu0 0
      %494 = vmatpush1.bf16.msra.mxu0 0
      %495 = vmatprep.subr.bf16.mxu0 0
      %496 = vmatpush1.bf16.msra.mxu0 0
      %497 = vmatprep.subr.bf16.mxu0 0
      %498 = vmatpush1.bf16.msra.mxu0 0
      %499 = vmatprep.subr.bf16.mxu0 0
      %500 = vmatpush1.bf16.msra.mxu0 0
      %501 = vmatprep.subr.bf16.mxu0 0
      %502 = vmatpush1.bf16.msra.mxu0 0
      %503 = vmatprep.subr.bf16.mxu0 0
      %504 = vmatpush1.bf16.msra.mxu0 0
      %505 = vmatprep.subr.bf16.mxu0 0
      %506 = vmatpush1.bf16.msra.mxu0 0
      %507 = vmatprep.subr.bf16.mxu0 0
      %508 = vmatpush1.bf16.msra.mxu0 0
      %509 = vmatprep.subr.bf16.mxu0 0
      %510 = vmatpush1.bf16.msra.mxu0 0
      %511 = vmatprep.subr.bf16.mxu0 0
      %512 = vmatpush1.bf16.msra.mxu0 0
      %513 = vmatprep.subr.bf16.mxu0 0
      %514 = vmatpush1.bf16.msra.mxu0 0
      %515 = vmatprep.subr.bf16.mxu0 0
      %516 = vmatpush1.bf16.msra.mxu0 0
      %517 = vmatprep.subr.bf16.mxu0 0
      %518 = vmatpush1.bf16.msra.mxu0 0
      %519 = vmatprep.subr.bf16.mxu0 0
      %520 = vmatpush1.bf16.msra.mxu0 0
      %521 = vmatprep.mubr.bf16.mxu0 0
      %522 = vmatmul.mubr.bf16.gmra.mrb[0].mxu0 %v483
      %v523 = vpop.f32.mrb[0].mxu0
      %v524 = vadd.f32 0.0, %v523
      %v525 = vpop.f32.mrb[0].mxu0
      %v526 = vpop.f32.mrb[0].mxu0
      %v527 = vpop.f32.mrb[0].mxu0
      %528 = vdwg.mxu0
      %529 = vst.msk [vmem:[#allocation2] sm:$0xff] %vm420, %v524
      %530 = vrot.lane.b32.xlu0 %v416, 112
      %v531 = vpop.permute.xlu0 %530
      %532 = vrot.lane.b32.xlu0 %v416, 80
      %v533 = vpop.permute.xlu0 %532
      %v535 = vsel %vm420, %v531, 0
      %v538 = vsel %vm420, %v533, 0
      %540 = vmatprep.subr.bf16.mxu0 0
      %541 = vmatpush1.bf16.xpose.msra.mxu0 %v538
      %542 = vmatprep.subr.bf16.mxu0 0
      %543 = vmatpush1.bf16.xpose.msra.mxu0 0
      %544 = vmatprep.subr.bf16.mxu0 0
      %545 = vmatpush1.bf16.xpose.msra.mxu0 0
      %546 = vmatprep.subr.bf16.mxu0 0
      %547 = vmatpush1.bf16.xpose.msra.mxu0 0
      %548 = vmatprep.subr.bf16.mxu0 0
      %549 = vmatpush1.bf16.xpose.msra.mxu0 0
      %550 = vmatprep.subr.bf16.mxu0 0
      %551 = vmatpush1.bf16.xpose.msra.mxu0 0
      %552 = vmatprep.subr.bf16.mxu0 0
      %553 = vmatpush1.bf16.xpose.msra.mxu0 0
      %554 = vmatprep.subr.bf16.mxu0 0
      %555 = vmatpush1.bf16.xpose.msra.mxu0 0
      %556 = vmatprep.subr.bf16.mxu0 0
      %557 = vmatpush1.bf16.xpose.msra.mxu0 0
      %558 = vmatprep.subr.bf16.mxu0 0
      %559 = vmatpush1.bf16.xpose.msra.mxu0 0
      %560 = vmatprep.subr.bf16.mxu0 0
      %561 = vmatpush1.bf16.xpose.msra.mxu0 0
      %562 = vmatprep.subr.bf16.mxu0 0
      %563 = vmatpush1.bf16.xpose.msra.mxu0 0
      %564 = vmatprep.subr.bf16.mxu0 0
      %565 = vmatpush1.bf16.xpose.msra.mxu0 0
      %566 = vmatprep.subr.bf16.mxu0 0
      %567 = vmatpush1.bf16.xpose.msra.mxu0 0
      %568 = vmatprep.subr.bf16.mxu0 0
      %569 = vmatpush1.bf16.xpose.msra.mxu0 0
      %570 = vmatprep.subr.bf16.mxu0 0
      %571 = vmatpush1.bf16.xpose.msra.mxu0 0
      %572 = vmatprep.mubr.bf16.mxu0 0
      %573 = vmatmul.mubr.bf16.gmra.mrb[0].mxu0 %v535
      %v574 = vpop.f32.mrb[0].mxu0
      %v575 = vadd.f32 %v349, %v574
      %v576 = vpop.f32.mrb[0].mxu0
      %v577 = vpop.f32.mrb[0].mxu0
      %v578 = vpop.f32.mrb[0].mxu0
      %579 = vdwg.mxu0
      %v580 = vsel %vm467, %v575, -inf
      %581 = vmax.xlane.f32.xlu0 %v580
      %v582 = vpop.xlane.xlu0 %581
      %v583 = vsub.f32 %v575, %v582
      %v584 = vmul.f32 %v583, 1.442695
      %v585 = vpow.pop %v584
      %v586 = vsel %vm467, %v585, 0.0
      %587 = vadd.xlane.f32.xlu0 %v586
      %v588 = vpop.xlane.xlu0 %587
      %v589 = vrcp.pop %v588
      %v590 = vmul.f32 %v585, %v589
      %v591 = vpack.c.bf16 %v590, %v590
      %592 = vrot.lane.b32.xlu0 %v416, 48
      %v593 = vpop.permute.xlu0 %592
      %v595 = vsel %vm467, %v591, 0
      %v598 = vsel %vm485, %v593, 0
      %600 = vmatprep.subr.bf16.mxu0 0
      %601 = vmatpush1.bf16.msra.mxu0 %v598
      %602 = vmatprep.subr.bf16.mxu0 0
      %603 = vmatpush1.bf16.msra.mxu0 0
      %604 = vmatprep.subr.bf16.mxu0 0
      %605 = vmatpush1.bf16.msra.mxu0 0
      %606 = vmatprep.subr.bf16.mxu0 0
      %607 = vmatpush1.bf16.msra.mxu0 0
      %608 = vmatprep.subr.bf16.mxu0 0
      %609 = vmatpush1.bf16.msra.mxu0 0
      %610 = vmatprep.subr.bf16.mxu0 0
      %611 = vmatpush1.bf16.msra.mxu0 0
      %612 = vmatprep.subr.bf16.mxu0 0
      %613 = vmatpush1.bf16.msra.mxu0 0
      %614 = vmatprep.subr.bf16.mxu0 0
      %615 = vmatpush1.bf16.msra.mxu0 0
      %616 = vmatprep.subr.bf16.mxu0 0
      %617 = vmatpush1.bf16.msra.mxu0 0
      %618 = vmatprep.subr.bf16.mxu0 0
      %619 = vmatpush1.bf16.msra.mxu0 0
      %620 = vmatprep.subr.bf16.mxu0 0
      %621 = vmatpush1.bf16.msra.mxu0 0
      %622 = vmatprep.subr.bf16.mxu0 0
      %623 = vmatpush1.bf16.msra.mxu0 0
      %624 = vmatprep.subr.bf16.mxu0 0
      %625 = vmatpush1.bf16.msra.mxu0 0
      %626 = vmatprep.subr.bf16.mxu0 0
      %627 = vmatpush1.bf16.msra.mxu0 0
      %628 = vmatprep.subr.bf16.mxu0 0
      %629 = vmatpush1.bf16.msra.mxu0 0
      %630 = vmatprep.subr.bf16.mxu0 0
      %631 = vmatpush1.bf16.msra.mxu0 0
      %632 = vmatprep.mubr.bf16.mxu0 0
      %633 = vmatmul.mubr.bf16.gmra.mrb[0].mxu0 %v595
      %v634 = vpop.f32.mrb[0].mxu0
      %v635 = vadd.f32 0.0, %v634
      %v636 = vpop.f32.mrb[0].mxu0
      %v637 = vpop.f32.mrb[0].mxu0
      %v638 = vpop.f32.mrb[0].mxu0
      %639 = vdwg.mxu0
      %641 = vrot.lane.b32.xlu0 %v635, 16
      %v642 = vpop.permute.xlu0 %641
      %vm644 = vcmask 261248
      %645 = vst.msk [vmem:[#allocation2] sm:$0xff] %vm644, %v642
      %v646 = vld [vmem:[#allocation2] sm:$0xff]
      %v647 = vpack.c.bf16 %v646, %v646
      %v648 = vld [vmem:[%s4] sm:$0xf]
      %v649 = vld [vmem:[%s4 + $0x4] sm:$0xf]
      %v650 = vld [vmem:[%s4 + $0x8] sm:$0xf]
      %v651 = vld [vmem:[%s4 + $0xc] sm:$0xf]
      %v652 = vld [vmem:[%s2 + $0x7] sm:$0x1]
      %v653 = vlaneseq
      %v654 = vshrl.u32 %v653, 7
      %v655 = vsub.s32 0, %v654
      %v656 = vrot.slane %v652, %v655
      %v661 = vunpack.c.l.b16 %v648
      %v662 = vunpack.c.l.b16 %v649
      %v663 = vunpack.c.l.b16 %v650
      %v664 = vunpack.c.l.b16 %v651
      %v665 = vpack.c.b16 %v662, %v661
      %v666 = vpack.c.b16 %v664, %v663
      %v670 = vsel %vm319, %v647, 0
      %672 = vmatprep.subr.bf16.mxu0 0
      %673 = vmatpush1.bf16.msra.mxu0 %v665
      %674 = vmatprep.subr.bf16.mxu0 0
      %675 = vmatpush1.bf16.msra.mxu0 %v666
      %676 = vmatprep.subr.bf16.mxu0 0
      %677 = vmatpush1.bf16.msra.mxu0 0
      %678 = vmatprep.subr.bf16.mxu0 0
      %679 = vmatpush1.bf16.msra.mxu0 0
      %680 = vmatprep.subr.bf16.mxu0 0
      %681 = vmatpush1.bf16.msra.mxu0 0
      %682 = vmatprep.subr.bf16.mxu0 0
      %683 = vmatpush1.bf16.msra.mxu0 0
      %684 = vmatprep.subr.bf16.mxu0 0
      %685 = vmatpush1.bf16.msra.mxu0 0
      %686 = vmatprep.subr.bf16.mxu0 0
      %687 = vmatpush1.bf16.msra.mxu0 0
      %688 = vmatprep.subr.bf16.mxu0 0
      %689 = vmatpush1.bf16.msra.mxu0 0
      %690 = vmatprep.subr.bf16.mxu0 0
      %691 = vmatpush1.bf16.msra.mxu0 0
      %692 = vmatprep.subr.bf16.mxu0 0
      %693 = vmatpush1.bf16.msra.mxu0 0
      %694 = vmatprep.subr.bf16.mxu0 0
      %695 = vmatpush1.bf16.msra.mxu0 0
      %696 = vmatprep.subr.bf16.mxu0 0
      %697 = vmatpush1.bf16.msra.mxu0 0
      %698 = vmatprep.subr.bf16.mxu0 0
      %699 = vmatpush1.bf16.msra.mxu0 0
      %700 = vmatprep.subr.bf16.mxu0 0
      %701 = vmatpush1.bf16.msra.mxu0 0
      %702 = vmatprep.subr.bf16.mxu0 0
      %703 = vmatpush1.bf16.msra.mxu0 0
      %704 = vmatprep.mubr.bf16.mxu0 0
      %705 = vmatmul.mubr.bf16.gmra.mrb[0].mxu0 %v670
      %v706 = vpop.f32.mrb[0].mxu0
      %v707 = vadd.f32 %v656, %v706
      %v708 = vpop.f32.mrb[0].mxu0
      %v709 = vpop.f32.mrb[0].mxu0
      %v710 = vpop.f32.mrb[0].mxu0
      %711 = vdwg.mxu0
      %v712 = vadd.f32 %v343, %v707
      %v713 = vld [vmem:[%s2 + $0x2] sm:$0x1]
      %v714 = vld [vmem:[%s2 + $0x3] sm:$0x1]
      %v715 = vsel %vm319, %v712, 0.0
      %716 = vadd.xlane.f32.xlu0 %v715
      %v717 = vpop.xlane.xlu0 %716
      %v718 = vmul.f32 %v717, %v323
      %v719 = vsub.f32 %v712, %v718
      %v720 = vmul.f32 %v719, %v719
      %v721 = vsel %vm319, %v720, 0.0
      %722 = vadd.xlane.f32.xlu0 %v721
      %v723 = vpop.xlane.xlu0 %722
      %v724 = vmul.f32 %v723, %v323
      %v725 = vadd.f32 %v724, 1e-12
      %v726 = vrsqrt.pop %v725
      %v727 = vmul.f32 %v719, %v726
      %v728 = vlaneseq
      %v729 = vshrl.u32 %v728, 7
      %v730 = vsub.s32 0, %v729
      %v731 = vrot.slane %v713, %v730
      %v732 = vmul.f32 %v727, %v731
      %v733 = vlaneseq
      %v734 = vshrl.u32 %v733, 7
      %v735 = vsub.s32 0, %v734
      %v736 = vrot.slane %v714, %v735
      %v737 = vadd.f32 %v732, %v736
      %v738 = vpack.c.bf16 %v737, %v737
      %v739 = vld [vmem:[%s5] sm:$0xf]
      %v740 = vld [vmem:[%s5 + $0x4] sm:$0xf]
      %v741 = vld [vmem:[%s5 + $0x8] sm:$0xf]
      %v742 = vld [vmem:[%s5 + $0xc] sm:$0xf]
      %v743 = vld [vmem:[%s2 + $0x8] sm:$0x1]
      %v744 = vlaneseq
      %v745 = vshrl.u32 %v744, 7
      %v746 = vsub.s32 0, %v745
      %v747 = vrot.slane %v743, %v746
      %v752 = vunpack.c.l.b16 %v739
      %v753 = vunpack.c.l.b16 %v740
      %v754 = vunpack.c.l.b16 %v741
      %v755 = vunpack.c.l.b16 %v742
      %v756 = vpack.c.b16 %v753, %v752
      %v757 = vpack.c.b16 %v755, %v754
      %v761 = vsel %vm319, %v738, 0
      %763 = vmatprep.subr.bf16.mxu0 0
      %764 = vmatpush1.bf16.msra.mxu0 %v756
      %765 = vmatprep.subr.bf16.mxu0 0
      %766 = vmatpush1.bf16.msra.mxu0 %v757
      %767 = vmatprep.subr.bf16.mxu0 0
      %768 = vmatpush1.bf16.msra.mxu0 0
      %769 = vmatprep.subr.bf16.mxu0 0
      %770 = vmatpush1.bf16.msra.mxu0 0
      %771 = vmatprep.subr.bf16.mxu0 0
      %772 = vmatpush1.bf16.msra.mxu0 0
      %773 = vmatprep.subr.bf16.mxu0 0
      %774 = vmatpush1.bf16.msra.mxu0 0
      %775 = vmatprep.subr.bf16.mxu0 0
      %776 = vmatpush1.bf16.msra.mxu0 0
      %777 = vmatprep.subr.bf16.mxu0 0
      %778 = vmatpush1.bf16.msra.mxu0 0
      %779 = vmatprep.subr.bf16.mxu0 0
      %780 = vmatpush1.bf16.msra.mxu0 0
      %781 = vmatprep.subr.bf16.mxu0 0
      %782 = vmatpush1.bf16.msra.mxu0 0
      %783 = vmatprep.subr.bf16.mxu0 0
      %784 = vmatpush1.bf16.msra.mxu0 0
      %785 = vmatprep.subr.bf16.mxu0 0
      %786 = vmatpush1.bf16.msra.mxu0 0
      %787 = vmatprep.subr.bf16.mxu0 0
      %788 = vmatpush1.bf16.msra.mxu0 0
      %789 = vmatprep.subr.bf16.mxu0 0
      %790 = vmatpush1.bf16.msra.mxu0 0
      %791 = vmatprep.subr.bf16.mxu0 0
      %792 = vmatpush1.bf16.msra.mxu0 0
      %793 = vmatprep.subr.bf16.mxu0 0
      %794 = vmatpush1.bf16.msra.mxu0 0
      %795 = vmatprep.mubr.bf16.mxu0 0
      %796 = vmatmul.mubr.bf16.gmra.mrb[0].mxu0 %v761
      %v797 = vpop.f32.mrb[0].mxu0
      %v798 = vadd.f32 %v747, %v797
      %v799 = vpop.f32.mrb[0].mxu0
      %v800 = vpop.f32.mrb[0].mxu0
      %v801 = vpop.f32.mrb[0].mxu0
      %802 = vdwg.mxu0
      %v803 = vmul.f32 %v798, 0.5
      %v804 = vmul.f32 %v798, 0.70710677
      %v805 = verf.f32.pop %v804
      %v806 = vadd.f32 %v805, 1.0
      %v807 = vmul.f32 %v803, %v806
      %v808 = vpack.c.bf16 %v807, %v807
      %v809 = vld [vmem:[%s6] sm:$0xf]
      %v810 = vld [vmem:[%s6 + $0x4] sm:$0xf]
      %v811 = vld [vmem:[%s6 + $0x8] sm:$0xf]
      %v812 = vld [vmem:[%s6 + $0xc] sm:$0xf]
      %v813 = vld [vmem:[%s6 + $0x10] sm:$0xf]
      %v814 = vld [vmem:[%s6 + $0x14] sm:$0xf]
      %v815 = vld [vmem:[%s6 + $0x18] sm:$0xf]
      %v816 = vld [vmem:[%s6 + $0x1c] sm:$0xf]
      %v817 = vld [vmem:[%s2 + $0x9] sm:$0x1]
      %v818 = vlaneseq
      %v819 = vshrl.u32 %v818, 7
      %v820 = vsub.s32 0, %v819
      %v821 = vrot.slane %v817, %v820
      %v830 = vunpack.c.l.b16 %v809
      %v831 = vunpack.c.l.b16 %v810
      %v832 = vunpack.c.l.b16 %v811
      %v833 = vunpack.c.l.b16 %v812
      %v834 = vunpack.c.l.b16 %v813
      %v835 = vunpack.c.l.b16 %v814
      %v836 = vunpack.c.l.b16 %v815
      %v837 = vunpack.c.l.b16 %v816
      %v838 = vpack.c.b16 %v831, %v830
      %v839 = vpack.c.b16 %v833, %v832
      %v840 = vpack.c.b16 %v835, %v834
      %v841 = vpack.c.b16 %v837, %v836
      %vm846 = vcmask 523264
      %v848 = vsel %vm846, %v808, 0
      %850 = vmatprep.subr.bf16.mxu0 0
      %851 = vmatpush1.bf16.msra.mxu0 %v838
      %852 = vmatprep.subr.bf16.mxu0 0
      %853 = vmatpush1.bf16.msra.mxu0 %v839
      %854 = vmatprep.subr.bf16.mxu0 0
      %855 = vmatpush1.bf16.msra.mxu0 %v840
      %856 = vmatprep.subr.bf16.mxu0 0
      %857 = vmatpush1.bf16.msra.mxu0 %v841
      %858 = vmatprep.subr.bf16.mxu0 0
      %859 = vmatpush1.bf16.msra.mxu0 0
      %860 = vmatprep.subr.bf16.mxu0 0
      %861 = vmatpush1.bf16.msra.mxu0 0
      %862 = vmatprep.subr.bf16.mxu0 0
      %863 = vmatpush1.bf16.msra.mxu0 0
      %864 = vmatprep.subr.bf16.mxu0 0
      %865 = vmatpush1.bf16.msra.mxu0 0
      %866 = vmatprep.subr.bf16.mxu0 0
      %867 = vmatpush1.bf16.msra.mxu0 0
      %868 = vmatprep.subr.bf16.mxu0 0
      %869 = vmatpush1.bf16.msra.mxu0 0
      %870 = vmatprep.subr.bf16.mxu0 0
      %871 = vmatpush1.bf16.msra.mxu0 0
      %872 = vmatprep.subr.bf16.mxu0 0
      %873 = vmatpush1.bf16.msra.mxu0 0
      %874 = vmatprep.subr.bf16.mxu0 0
      %875 = vmatpush1.bf16.msra.mxu0 0
      %876 = vmatprep.subr.bf16.mxu0 0
      %877 = vmatpush1.bf16.msra.mxu0 0
      %878 = vmatprep.subr.bf16.mxu0 0
      %879 = vmatpush1.bf16.msra.mxu0 0
      %880 = vmatprep.subr.bf16.mxu0 0
      %881 = vmatpush1.bf16.msra.mxu0 0
      %882 = vmatprep.mubr.bf16.mxu0 0
      %883 = vmatmul.mubr.bf16.gmra.mrb[0].mxu0 %v848
      %v884 = vpop.f32.mrb[0].mxu0
      %v885 = vadd.f32 %v821, %v884
      %v886 = vpop.f32.mrb[0].mxu0
      %v887 = vpop.f32.mrb[0].mxu0
      %v888 = vpop.f32.mrb[0].mxu0
      %889 = vdwg.mxu0
      %v890 = vadd.f32 %v737, %v885
      %v891 = vld [vmem:[%s2 + $0x4] sm:$0x1]
      %v892 = vld [vmem:[%s2 + $0x5] sm:$0x1]
      %v893 = vsel %vm319, %v890, 0.0
      %894 = vadd.xlane.f32.xlu0 %v893
      %v895 = vpop.xlane.xlu0 %894
      %v896 = vmul.f32 %v895, %v323
      %v897 = vsub.f32 %v890, %v896
      %v898 = vmul.f32 %v897, %v897
      %v899 = vsel %vm319, %v898, 0.0
      %900 = vadd.xlane.f32.xlu0 %v899
      %v901 = vpop.xlane.xlu0 %900
      %v902 = vmul.f32 %v901, %v323
      %v903 = vadd.f32 %v902, 1e-12
      %v904 = vrsqrt.pop %v903
      %v905 = vmul.f32 %v897, %v904
      %v906 = vlaneseq
      %v907 = vshrl.u32 %v906, 7
      %v908 = vsub.s32 0, %v907
      %v909 = vrot.slane %v891, %v908
      %v910 = vmul.f32 %v905, %v909
      %v911 = vlaneseq
      %v912 = vshrl.u32 %v911, 7
      %v913 = vsub.s32 0, %v912
      %v914 = vrot.slane %v892, %v913
      %v915 = vadd.f32 %v910, %v914
      %v916 = vpack.c.bf16 %v915, %v915
      %s917 = scalar_lea.vmem %s3, 16
      %v918 = vld [vmem:[%s917] sm:$0xf]
      %v919 = vld [vmem:[%s917 + $0x4] sm:$0xf]
      %v920 = vld [vmem:[%s917 + $0x8] sm:$0xf]
      %v921 = vld [vmem:[%s917 + $0xc] sm:$0xf]
      %v922 = vld [vmem:[%s2 + $0xe] sm:$0x1]
      %v923 = vlaneseq
      %v924 = vshrl.u32 %v923, 7
      %v925 = vsub.s32 0, %v924
      %v926 = vrot.slane %v922, %v925
      %v931 = vunpack.c.l.b16 %v918
      %v932 = vunpack.c.l.b16 %v919
      %v933 = vunpack.c.l.b16 %v920
      %v934 = vunpack.c.l.b16 %v921
      %v935 = vpack.c.b16 %v932, %v931
      %v936 = vpack.c.b16 %v934, %v933
      %v940 = vsel %vm319, %v916, 0
      %942 = vmatprep.subr.bf16.mxu0 0
      %943 = vmatpush1.bf16.msra.mxu0 %v935
      %944 = vmatprep.subr.bf16.mxu0 0
      %945 = vmatpush1.bf16.msra.mxu0 %v936
      %946 = vmatprep.subr.bf16.mxu0 0
      %947 = vmatpush1.bf16.msra.mxu0 0
      %948 = vmatprep.subr.bf16.mxu0 0
      %949 = vmatpush1.bf16.msra.mxu0 0
      %950 = vmatprep.subr.bf16.mxu0 0
      %951 = vmatpush1.bf16.msra.mxu0 0
      %952 = vmatprep.subr.bf16.mxu0 0
      %953 = vmatpush1.bf16.msra.mxu0 0
      %954 = vmatprep.subr.bf16.mxu0 0
      %955 = vmatpush1.bf16.msra.mxu0 0
      %956 = vmatprep.subr.bf16.mxu0 0
      %957 = vmatpush1.bf16.msra.mxu0 0
      %958 = vmatprep.subr.bf16.mxu0 0
      %959 = vmatpush1.bf16.msra.mxu0 0
      %960 = vmatprep.subr.bf16.mxu0 0
      %961 = vmatpush1.bf16.msra.mxu0 0
      %962 = vmatprep.subr.bf16.mxu0 0
      %963 = vmatpush1.bf16.msra.mxu0 0
      %964 = vmatprep.subr.bf16.mxu0 0
      %965 = vmatpush1.bf16.msra.mxu0 0
      %966 = vmatprep.subr.bf16.mxu0 0
      %967 = vmatpush1.bf16.msra.mxu0 0
      %968 = vmatprep.subr.bf16.mxu0 0
      %969 = vmatpush1.bf16.msra.mxu0 0
      %970 = vmatprep.subr.bf16.mxu0 0
      %971 = vmatpush1.bf16.msra.mxu0 0
      %972 = vmatprep.subr.bf16.mxu0 0
      %973 = vmatpush1.bf16.msra.mxu0 0
      %974 = vmatprep.mubr.bf16.mxu0 0
      %975 = vmatmul.mubr.bf16.gmra.mrb[0].mxu0 %v940
      %v976 = vpop.f32.mrb[0].mxu0
      %v977 = vadd.f32 %v926, %v976
      %v978 = vpop.f32.mrb[0].mxu0
      %v979 = vpop.f32.mrb[0].mxu0
      %v980 = vpop.f32.mrb[0].mxu0
      %981 = vdwg.mxu0
      %v982 = vpack.c.bf16 %v977, %v977
      %984 = vrot.lane.b32.xlu0 %v982, 96
      %v985 = vpop.permute.xlu0 %984
      %v987 = vsel %vm420, %v982, 0
      %v990 = vsel %vm420, %v985, 0
      %992 = vmatprep.subr.bf16.mxu0 0
      %993 = vmatpush1.bf16.xpose.msra.mxu0 %v990
      %994 = vmatprep.subr.bf16.mxu0 0
      %995 = vmatpush1.bf16.xpose.msra.mxu0 0
      %996 = vmatprep.subr.bf16.mxu0 0
      %997 = vmatpush1.bf16.xpose.msra.mxu0 0
      %998 = vmatprep.subr.bf16.mxu0 0
      %999 = vmatpush1.bf16.xpose.msra.mxu0 0
      %1000 = vmatprep.subr.bf16.mxu0 0
      %1001 = vmatpush1.bf16.xpose.msra.mxu0 0
      %1002 = vmatprep.subr.bf16.mxu0 0
      %1003 = vmatpush1.bf16.xpose.msra.mxu0 0
      %1004 = vmatprep.subr.bf16.mxu0 0
      %1005 = vmatpush1.bf16.xpose.msra.mxu0 0
      %1006 = vmatprep.subr.bf16.mxu0 0
      %1007 = vmatpush1.bf16.xpose.msra.mxu0 0
      %1008 = vmatprep.subr.bf16.mxu0 0
      %1009 = vmatpush1.bf16.xpose.msra.mxu0 0
      %1010 = vmatprep.subr.bf16.mxu0 0
      %1011 = vmatpush1.bf16.xpose.msra.mxu0 0
      %1012 = vmatprep.subr.bf16.mxu0 0
      %1013 = vmatpush1.bf16.xpose.msra.mxu0 0
      %1014 = vmatprep.subr.bf16.mxu0 0
      %1015 = vmatpush1.bf16.xpose.msra.mxu0 0
      %1016 = vmatprep.subr.bf16.mxu0 0
      %1017 = vmatpush1.bf16.xpose.msra.mxu0 0
      %1018 = vmatprep.subr.bf16.mxu0 0
      %1019 = vmatpush1.bf16.xpose.msra.mxu0 0
      %1020 = vmatprep.subr.bf16.mxu0 0
      %1021 = vmatpush1.bf16.xpose.msra.mxu0 0
      %1022 = vmatprep.subr.bf16.mxu0 0
      %1023 = vmatpush1.bf16.xpose.msra.mxu0 0
      %1024 = vmatprep.mubr.bf16.mxu0 0
      %1025 = vmatmul.mubr.bf16.gmra.mrb[0].mxu0 %v987
      %v1026 = vpop.f32.mrb[0].mxu0
      %v1027 = vadd.f32 %v349, %v1026
      %v1028 = vpop.f32.mrb[0].mxu0
      %v1029 = vpop.f32.mrb[0].mxu0
      %v1030 = vpop.f32.mrb[0].mxu0
      %1031 = vdwg.mxu0
      %v1032 = vsel %vm467, %v1027, -inf
      %1033 = vmax.xlane.f32.xlu0 %v1032
      %v1034 = vpop.xlane.xlu0 %1033
      %v1035 = vsub.f32 %v1027, %v1034
      %v1036 = vmul.f32 %v1035, 1.442695
      %v1037 = vpow.pop %v1036
      %v1038 = vsel %vm467, %v1037, 0.0
      %1039 = vadd.xlane.f32.xlu0 %v1038
      %v1040 = vpop.xlane.xlu0 %1039
      %v1041 = vrcp.pop %v1040
      %v1042 = vmul.f32 %v1037, %v1041
      %v1043 = vpack.c.bf16 %v1042, %v1042
      %1044 = vrot.lane.b32.xlu0 %v982, 64
      %v1045 = vpop.permute.xlu0 %1044
      %v1047 = vsel %vm467, %v1043, 0
      %v1050 = vsel %vm485, %v1045, 0
      %1052 = vmatprep.subr.bf16.mxu0 0
      %1053 = vmatpush1.bf16.msra.mxu0 %v1050
      %1054 = vmatprep.subr.bf16.mxu0 0
      %1055 = vmatpush1.bf16.msra.mxu0 0
      %1056 = vmatprep.subr.bf16.mxu0 0
      %1057 = vmatpush1.bf16.msra.mxu0 0
      %1058 = vmatprep.subr.bf16.mxu0 0
      %1059 = vmatpush1.bf16.msra.mxu0 0
      %1060 = vmatprep.subr.bf16.mxu0 0
      %1061 = vmatpush1.bf16.msra.mxu0 0
      %1062 = vmatprep.subr.bf16.mxu0 0
      %1063 = vmatpush1.bf16.msra.mxu0 0
      %1064 = vmatprep.subr.bf16.mxu0 0
      %1065 = vmatpush1.bf16.msra.mxu0 0
      %1066 = vmatprep.subr.bf16.mxu0 0
      %1067 = vmatpush1.bf16.msra.mxu0 0
      %1068 = vmatprep.subr.bf16.mxu0 0
      %1069 = vmatpush1.bf16.msra.mxu0 0
      %1070 = vmatprep.subr.bf16.mxu0 0
      %1071 = vmatpush1.bf16.msra.mxu0 0
      %1072 = vmatprep.subr.bf16.mxu0 0
      %1073 = vmatpush1.bf16.msra.mxu0 0
      %1074 = vmatprep.subr.bf16.mxu0 0
      %1075 = vmatpush1.bf16.msra.mxu0 0
      %1076 = vmatprep.subr.bf16.mxu0 0
      %1077 = vmatpush1.bf16.msra.mxu0 0
      %1078 = vmatprep.subr.bf16.mxu0 0
      %1079 = vmatpush1.bf16.msra.mxu0 0
      %1080 = vmatprep.subr.bf16.mxu0 0
      %1081 = vmatpush1.bf16.msra.mxu0 0
      %1082 = vmatprep.subr.bf16.mxu0 0
      %1083 = vmatpush1.bf16.msra.mxu0 0
      %1084 = vmatprep.mubr.bf16.mxu0 0
      %1085 = vmatmul.mubr.bf16.gmra.mrb[0].mxu0 %v1047
      %v1086 = vpop.f32.mrb[0].mxu0
      %v1087 = vadd.f32 0.0, %v1086
      %v1088 = vpop.f32.mrb[0].mxu0
      %v1089 = vpop.f32.mrb[0].mxu0
      %v1090 = vpop.f32.mrb[0].mxu0
      %1091 = vdwg.mxu0
      %1092 = vst.msk [vmem:[#allocation2] sm:$0xff] %vm420, %v1087
      %1093 = vrot.lane.b32.xlu0 %v982, 112
      %v1094 = vpop.permute.xlu0 %1093
      %1095 = vrot.lane.b32.xlu0 %v982, 80
      %v1096 = vpop.permute.xlu0 %1095
      %v1098 = vsel %vm420, %v1094, 0
      %v1101 = vsel %vm420, %v1096, 0
      %1103 = vmatprep.subr.bf16.mxu0 0
      %1104 = vmatpush1.bf16.xpose.msra.mxu0 %v1101
      %1105 = vmatprep.subr.bf16.mxu0 0
      %1106 = vmatpush1.bf16.xpose.msra.mxu0 0
      %1107 = vmatprep.subr.bf16.mxu0 0
      %1108 = vmatpush1.bf16.xpose.msra.mxu0 0
      %1109 = vmatprep.subr.bf16.mxu0 0
      %1110 = vmatpush1.bf16.xpose.msra.mxu0 0
      %1111 = vmatprep.subr.bf16.mxu0 0
      %1112 = vmatpush1.bf16.xpose.msra.mxu0 0
      %1113 = vmatprep.subr.bf16.mxu0 0
      %1114 = vmatpush1.bf16.xpose.msra.mxu0 0
      %1115 = vmatprep.subr.bf16.mxu0 0
      %1116 = vmatpush1.bf16.xpose.msra.mxu0 0
      %1117 = vmatprep.subr.bf16.mxu0 0
      %1118 = vmatpush1.bf16.xpose.msra.mxu0 0
      %1119 = vmatprep.subr.bf16.mxu0 0
      %1120 = vmatpush1.bf16.xpose.msra.mxu0 0
      %1121 = vmatprep.subr.bf16.mxu0 0
      %1122 = vmatpush1.bf16.xpose.msra.mxu0 0
      %1123 = vmatprep.subr.bf16.mxu0 0
      %1124 = vmatpush1.bf16.xpose.msra.mxu0 0
      %1125 = vmatprep.subr.bf16.mxu0 0
      %1126 = vmatpush1.bf16.xpose.msra.mxu0 0
      %1127 = vmatprep.subr.bf16.mxu0 0
      %1128 = vmatpush1.bf16.xpose.msra.mxu0 0
      %1129 = vmatprep.subr.bf16.mxu0 0
      %1130 = vmatpush1.bf16.xpose.msra.mxu0 0
      %1131 = vmatprep.subr.bf16.mxu0 0
      %1132 = vmatpush1.bf16.xpose.msra.mxu0 0
      %1133 = vmatprep.subr.bf16.mxu0 0
      %1134 = vmatpush1.bf16.xpose.msra.mxu0 0
      %1135 = vmatprep.mubr.bf16.mxu0 0
      %1136 = vmatmul.mubr.bf16.gmra.mrb[0].mxu0 %v1098
      %v1137 = vpop.f32.mrb[0].mxu0
      %v1138 = vadd.f32 %v349, %v1137
      %v1139 = vpop.f32.mrb[0].mxu0
      %v1140 = vpop.f32.mrb[0].mxu0
      %v1141 = vpop.f32.mrb[0].mxu0
      %1142 = vdwg.mxu0
      %v1143 = vsel %vm467, %v1138, -inf
      %1144 = vmax.xlane.f32.xlu0 %v1143
      %v1145 = vpop.xlane.xlu0 %1144
      %v1146 = vsub.f32 %v1138, %v1145
      %v1147 = vmul.f32 %v1146, 1.442695
      %v1148 = vpow.pop %v1147
      %v1149 = vsel %vm467, %v1148, 0.0
      %1150 = vadd.xlane.f32.xlu0 %v1149
      %v1151 = vpop.xlane.xlu0 %1150
      %v1152 = vrcp.pop %v1151
      %v1153 = vmul.f32 %v1148, %v1152
      %v1154 = vpack.c.bf16 %v1153, %v1153
      %1155 = vrot.lane.b32.xlu0 %v982, 48
      %v1156 = vpop.permute.xlu0 %1155
      %v1158 = vsel %vm467, %v1154, 0
      %v1161 = vsel %vm485, %v1156, 0
      %1163 = vmatprep.subr.bf16.mxu0 0
      %1164 = vmatpush1.bf16.msra.mxu0 %v1161
      %1165 = vmatprep.subr.bf16.mxu0 0
      %1166 = vmatpush1.bf16.msra.mxu0 0
      %1167 = vmatprep.subr.bf16.mxu0 0
      %1168 = vmatpush1.bf16.msra.mxu0 0
      %1169 = vmatprep.subr.bf16.mxu0 0
      %1170 = vmatpush1.bf16.msra.mxu0 0
      %1171 = vmatprep.subr.bf16.mxu0 0
      %1172 = vmatpush1.bf16.msra.mxu0 0
      %1173 = vmatprep.subr.bf16.mxu0 0
      %1174 = vmatpush1.bf16.msra.mxu0 0
      %1175 = vmatprep.subr.bf16.mxu0 0
      %1176 = vmatpush1.bf16.msra.mxu0 0
      %1177 = vmatprep.subr.bf16.mxu0 0
      %1178 = vmatpush1.bf16.msra.mxu0 0
      %1179 = vmatprep.subr.bf16.mxu0 0
      %1180 = vmatpush1.bf16.msra.mxu0 0
      %1181 = vmatprep.subr.bf16.mxu0 0
      %1182 = vmatpush1.bf16.msra.mxu0 0
      %1183 = vmatprep.subr.bf16.mxu0 0
      %1184 = vmatpush1.bf16.msra.mxu0 0
      %1185 = vmatprep.subr.bf16.mxu0 0
      %1186 = vmatpush1.bf16.msra.mxu0 0
      %1187 = vmatprep.subr.bf16.mxu0 0
      %1188 = vmatpush1.bf16.msra.mxu0 0
      %1189 = vmatprep.subr.bf16.mxu0 0
      %1190 = vmatpush1.bf16.msra.mxu0 0
      %1191 = vmatprep.subr.bf16.mxu0 0
      %1192 = vmatpush1.bf16.msra.mxu0 0
      %1193 = vmatprep.subr.bf16.mxu0 0
      %1194 = vmatpush1.bf16.msra.mxu0 0
      %1195 = vmatprep.mubr.bf16.mxu0 0
      %1196 = vmatmul.mubr.bf16.gmra.mrb[0].mxu0 %v1158
      %v1197 = vpop.f32.mrb[0].mxu0
      %v1198 = vadd.f32 0.0, %v1197
      %v1199 = vpop.f32.mrb[0].mxu0
      %v1200 = vpop.f32.mrb[0].mxu0
      %v1201 = vpop.f32.mrb[0].mxu0
      %1202 = vdwg.mxu0
      %1204 = vrot.lane.b32.xlu0 %v1198, 16
      %v1205 = vpop.permute.xlu0 %1204
      %1207 = vst.msk [vmem:[#allocation2] sm:$0xff] %vm644, %v1205
      %v1208 = vld [vmem:[#allocation2] sm:$0xff]
      %v1209 = vpack.c.bf16 %v1208, %v1208
      %s1210 = scalar_lea.vmem %s4, 16
      %v1211 = vld [vmem:[%s1210] sm:$0xf]
      %v1212 = vld [vmem:[%s1210 + $0x4] sm:$0xf]
      %v1213 = vld [vmem:[%s1210 + $0x8] sm:$0xf]
      %v1214 = vld [vmem:[%s1210 + $0xc] sm:$0xf]
      %v1215 = vld [vmem:[%s2 + $0xf] sm:$0x1]
      %v1216 = vlaneseq
      %v1217 = vshrl.u32 %v1216, 7
      %v1218 = vsub.s32 0, %v1217
      %v1219 = vrot.slane %v1215, %v1218
      %v1224 = vunpack.c.l.b16 %v1211
      %v1225 = vunpack.c.l.b16 %v1212
      %v1226 = vunpack.c.l.b16 %v1213
      %v1227 = vunpack.c.l.b16 %v1214
      %v1228 = vpack.c.b16 %v1225, %v1224
      %v1229 = vpack.c.b16 %v1227, %v1226
      %v1233 = vsel %vm319, %v1209, 0
      %1235 = vmatprep.subr.bf16.mxu0 0
      %1236 = vmatpush1.bf16.msra.mxu0 %v1228
      %1237 = vmatprep.subr.bf16.mxu0 0
      %1238 = vmatpush1.bf16.msra.mxu0 %v1229
      %1239 = vmatprep.subr.bf16.mxu0 0
      %1240 = vmatpush1.bf16.msra.mxu0 0
      %1241 = vmatprep.subr.bf16.mxu0 0
      %1242 = vmatpush1.bf16.msra.mxu0 0
      %1243 = vmatprep.subr.bf16.mxu0 0
      %1244 = vmatpush1.bf16.msra.mxu0 0
      %1245 = vmatprep.subr.bf16.mxu0 0
      %1246 = vmatpush1.bf16.msra.mxu0 0
      %1247 = vmatprep.subr.bf16.mxu0 0
      %1248 = vmatpush1.bf16.msra.mxu0 0
      %1249 = vmatprep.subr.bf16.mxu0 0
      %1250 = vmatpush1.bf16.msra.mxu0 0
      %1251 = vmatprep.subr.bf16.mxu0 0
      %1252 = vmatpush1.bf16.msra.mxu0 0
      %1253 = vmatprep.subr.bf16.mxu0 0
      %1254 = vmatpush1.bf16.msra.mxu0 0
      %1255 = vmatprep.subr.bf16.mxu0 0
      %1256 = vmatpush1.bf16.msra.mxu0 0
      %1257 = vmatprep.subr.bf16.mxu0 0
      %1258 = vmatpush1.bf16.msra.mxu0 0
      %1259 = vmatprep.subr.bf16.mxu0 0
      %1260 = vmatpush1.bf16.msra.mxu0 0
      %1261 = vmatprep.subr.bf16.mxu0 0
      %1262 = vmatpush1.bf16.msra.mxu0 0
      %1263 = vmatprep.subr.bf16.mxu0 0
      %1264 = vmatpush1.bf16.msra.mxu0 0
      %1265 = vmatprep.subr.bf16.mxu0 0
      %1266 = vmatpush1.bf16.msra.mxu0 0
      %1267 = vmatprep.mubr.bf16.mxu0 0
      %1268 = vmatmul.mubr.bf16.gmra.mrb[0].mxu0 %v1233
      %v1269 = vpop.f32.mrb[0].mxu0
      %v1270 = vadd.f32 %v1219, %v1269
      %v1271 = vpop.f32.mrb[0].mxu0
      %v1272 = vpop.f32.mrb[0].mxu0
      %v1273 = vpop.f32.mrb[0].mxu0
      %1274 = vdwg.mxu0
      %v1275 = vadd.f32 %v915, %v1270
      %v1276 = vld [vmem:[%s2 + $0xa] sm:$0x1]
      %v1277 = vld [vmem:[%s2 + $0xb] sm:$0x1]
      %v1278 = vsel %vm319, %v1275, 0.0
      %1279 = vadd.xlane.f32.xlu0 %v1278
      %v1280 = vpop.xlane.xlu0 %1279
      %v1281 = vmul.f32 %v1280, %v323
      %v1282 = vsub.f32 %v1275, %v1281
      %v1283 = vmul.f32 %v1282, %v1282
      %v1284 = vsel %vm319, %v1283, 0.0
      %1285 = vadd.xlane.f32.xlu0 %v1284
      %v1286 = vpop.xlane.xlu0 %1285
      %v1287 = vmul.f32 %v1286, %v323
      %v1288 = vadd.f32 %v1287, 1e-12
      %v1289 = vrsqrt.pop %v1288
      %v1290 = vmul.f32 %v1282, %v1289
      %v1291 = vlaneseq
      %v1292 = vshrl.u32 %v1291, 7
      %v1293 = vsub.s32 0, %v1292
      %v1294 = vrot.slane %v1276, %v1293
      %v1295 = vmul.f32 %v1290, %v1294
      %v1296 = vlaneseq
      %v1297 = vshrl.u32 %v1296, 7
      %v1298 = vsub.s32 0, %v1297
      %v1299 = vrot.slane %v1277, %v1298
      %v1300 = vadd.f32 %v1295, %v1299
      %v1301 = vpack.c.bf16 %v1300, %v1300
      %s1302 = scalar_lea.vmem %s5, 16
      %v1303 = vld [vmem:[%s1302] sm:$0xf]
      %v1304 = vld [vmem:[%s1302 + $0x4] sm:$0xf]
      %v1305 = vld [vmem:[%s1302 + $0x8] sm:$0xf]
      %v1306 = vld [vmem:[%s1302 + $0xc] sm:$0xf]
      %v1307 = vld [vmem:[%s2 + $0x10] sm:$0x1]
      %v1308 = vlaneseq
      %v1309 = vshrl.u32 %v1308, 7
      %v1310 = vsub.s32 0, %v1309
      %v1311 = vrot.slane %v1307, %v1310
      %v1316 = vunpack.c.l.b16 %v1303
      %v1317 = vunpack.c.l.b16 %v1304
      %v1318 = vunpack.c.l.b16 %v1305
      %v1319 = vunpack.c.l.b16 %v1306
      %v1320 = vpack.c.b16 %v1317, %v1316
      %v1321 = vpack.c.b16 %v1319, %v1318
      %v1325 = vsel %vm319, %v1301, 0
      %1327 = vmatprep.subr.bf16.mxu0 0
      %1328 = vmatpush1.bf16.msra.mxu0 %v1320
      %1329 = vmatprep.subr.bf16.mxu0 0
      %1330 = vmatpush1.bf16.msra.mxu0 %v1321
      %1331 = vmatprep.subr.bf16.mxu0 0
      %1332 = vmatpush1.bf16.msra.mxu0 0
      %1333 = vmatprep.subr.bf16.mxu0 0
      %1334 = vmatpush1.bf16.msra.mxu0 0
      %1335 = vmatprep.subr.bf16.mxu0 0
      %1336 = vmatpush1.bf16.msra.mxu0 0
      %1337 = vmatprep.subr.bf16.mxu0 0
      %1338 = vmatpush1.bf16.msra.mxu0 0
      %1339 = vmatprep.subr.bf16.mxu0 0
      %1340 = vmatpush1.bf16.msra.mxu0 0
      %1341 = vmatprep.subr.bf16.mxu0 0
      %1342 = vmatpush1.bf16.msra.mxu0 0
      %1343 = vmatprep.subr.bf16.mxu0 0
      %1344 = vmatpush1.bf16.msra.mxu0 0
      %1345 = vmatprep.subr.bf16.mxu0 0
      %1346 = vmatpush1.bf16.msra.mxu0 0
      %1347 = vmatprep.subr.bf16.mxu0 0
      %1348 = vmatpush1.bf16.msra.mxu0 0
      %1349 = vmatprep.subr.bf16.mxu0 0
      %1350 = vmatpush1.bf16.msra.mxu0 0
      %1351 = vmatprep.subr.bf16.mxu0 0
      %1352 = vmatpush1.bf16.msra.mxu0 0
      %1353 = vmatprep.subr.bf16.mxu0 0
      %1354 = vmatpush1.bf16.msra.mxu0 0
      %1355 = vmatprep.subr.bf16.mxu0 0
      %1356 = vmatpush1.bf16.msra.mxu0 0
      %1357 = vmatprep.subr.bf16.mxu0 0
      %1358 = vmatpush1.bf16.msra.mxu0 0
      %1359 = vmatprep.mubr.bf16.mxu0 0
      %1360 = vmatmul.mubr.bf16.gmra.mrb[0].mxu0 %v1325
      %v1361 = vpop.f32.mrb[0].mxu0
      %v1362 = vadd.f32 %v1311, %v1361
      %v1363 = vpop.f32.mrb[0].mxu0
      %v1364 = vpop.f32.mrb[0].mxu0
      %v1365 = vpop.f32.mrb[0].mxu0
      %1366 = vdwg.mxu0
      %v1367 = vmul.f32 %v1362, 0.5
      %v1368 = vmul.f32 %v1362, 0.70710677
      %v1369 = verf.f32.pop %v1368
      %v1370 = vadd.f32 %v1369, 1.0
      %v1371 = vmul.f32 %v1367, %v1370
      %v1372 = vpack.c.bf16 %v1371, %v1371
      %s1373 = scalar_lea.vmem %s6, 32
      %v1374 = vld [vmem:[%s1373] sm:$0xf]
      %v1375 = vld [vmem:[%s1373 + $0x4] sm:$0xf]
      %v1376 = vld [vmem:[%s1373 + $0x8] sm:$0xf]
      %v1377 = vld [vmem:[%s1373 + $0xc] sm:$0xf]
      %v1378 = vld [vmem:[%s1373 + $0x10] sm:$0xf]
      %v1379 = vld [vmem:[%s1373 + $0x14] sm:$0xf]
      %v1380 = vld [vmem:[%s1373 + $0x18] sm:$0xf]
      %v1381 = vld [vmem:[%s1373 + $0x1c] sm:$0xf]
      %v1382 = vld [vmem:[%s2 + $0x11] sm:$0x1]
      %v1383 = vlaneseq
      %v1384 = vshrl.u32 %v1383, 7
      %v1385 = vsub.s32 0, %v1384
      %v1386 = vrot.slane %v1382, %v1385
      %v1395 = vunpack.c.l.b16 %v1374
      %v1396 = vunpack.c.l.b16 %v1375
      %v1397 = vunpack.c.l.b16 %v1376
      %v1398 = vunpack.c.l.b16 %v1377
      %v1399 = vunpack.c.l.b16 %v1378
      %v1400 = vunpack.c.l.b16 %v1379
      %v1401 = vunpack.c.l.b16 %v1380
      %v1402 = vunpack.c.l.b16 %v1381
      %v1403 = vpack.c.b16 %v1396, %v1395
      %v1404 = vpack.c.b16 %v1398, %v1397
      %v1405 = vpack.c.b16 %v1400, %v1399
      %v1406 = vpack.c.b16 %v1402, %v1401
      %v1412 = vsel %vm846, %v1372, 0
      %1414 = vmatprep.subr.bf16.mxu0 0
      %1415 = vmatpush1.bf16.msra.mxu0 %v1403
      %1416 = vmatprep.subr.bf16.mxu0 0
      %1417 = vmatpush1.bf16.msra.mxu0 %v1404
      %1418 = vmatprep.subr.bf16.mxu0 0
      %1419 = vmatpush1.bf16.msra.mxu0 %v1405
      %1420 = vmatprep.subr.bf16.mxu0 0
      %1421 = vmatpush1.bf16.msra.mxu0 %v1406
      %1422 = vmatprep.subr.bf16.mxu0 0
      %1423 = vmatpush1.bf16.msra.mxu0 0
      %1424 = vmatprep.subr.bf16.mxu0 0
      %1425 = vmatpush1.bf16.msra.mxu0 0
      %1426 = vmatprep.subr.bf16.mxu0 0
      %1427 = vmatpush1.bf16.msra.mxu0 0
      %1428 = vmatprep.subr.bf16.mxu0 0
      %1429 = vmatpush1.bf16.msra.mxu0 0
      %1430 = vmatprep.subr.bf16.mxu0 0
      %1431 = vmatpush1.bf16.msra.mxu0 0
      %1432 = vmatprep.subr.bf16.mxu0 0
      %1433 = vmatpush1.bf16.msra.mxu0 0
      %1434 = vmatprep.subr.bf16.mxu0 0
      %1435 = vmatpush1.bf16.msra.mxu0 0
      %1436 = vmatprep.subr.bf16.mxu0 0
      %1437 = vmatpush1.bf16.msra.mxu0 0
      %1438 = vmatprep.subr.bf16.mxu0 0
      %1439 = vmatpush1.bf16.msra.mxu0 0
      %1440 = vmatprep.subr.bf16.mxu0 0
      %1441 = vmatpush1.bf16.msra.mxu0 0
      %1442 = vmatprep.subr.bf16.mxu0 0
      %1443 = vmatpush1.bf16.msra.mxu0 0
      %1444 = vmatprep.subr.bf16.mxu0 0
      %1445 = vmatpush1.bf16.msra.mxu0 0
      %1446 = vmatprep.mubr.bf16.mxu0 0
      %1447 = vmatmul.mubr.bf16.gmra.mrb[0].mxu0 %v1412
      %v1448 = vpop.f32.mrb[0].mxu0
      %v1449 = vadd.f32 %v1386, %v1448
      %v1450 = vpop.f32.mrb[0].mxu0
      %v1451 = vpop.f32.mrb[0].mxu0
      %v1452 = vpop.f32.mrb[0].mxu0
      %1453 = vdwg.mxu0
      %v1454 = vadd.f32 %v1300, %v1449
      %v1455 = vld [vmem:[%s2 + $0xc] sm:$0x1]
      %v1456 = vld [vmem:[%s2 + $0xd] sm:$0x1]
      %v1457 = vsel %vm319, %v1454, 0.0
      %1458 = vadd.xlane.f32.xlu0 %v1457
      %v1459 = vpop.xlane.xlu0 %1458
      %v1460 = vmul.f32 %v1459, %v323
      %v1461 = vsub.f32 %v1454, %v1460
      %v1462 = vmul.f32 %v1461, %v1461
      %v1463 = vsel %vm319, %v1462, 0.0
      %1464 = vadd.xlane.f32.xlu0 %v1463
      %v1465 = vpop.xlane.xlu0 %1464
      %v1466 = vmul.f32 %v1465, %v323
      %v1467 = vadd.f32 %v1466, 1e-12
      %v1468 = vrsqrt.pop %v1467
      %v1469 = vmul.f32 %v1461, %v1468
      %v1470 = vlaneseq
      %v1471 = vshrl.u32 %v1470, 7
      %v1472 = vsub.s32 0, %v1471
      %v1473 = vrot.slane %v1455, %v1472
      %v1474 = vmul.f32 %v1469, %v1473
      %v1475 = vlaneseq
      %v1476 = vshrl.u32 %v1475, 7
      %v1477 = vsub.s32 0, %v1476
      %v1478 = vrot.slane %v1456, %v1477
      %v1479 = vadd.f32 %v1474, %v1478
      %v1480 = vpack.c.bf16 %v1479, %v1479
      %v1481 = vld [vmem:[%s7] sm:$0xf]
      %v1482 = vld [vmem:[%s7 + $0x4] sm:$0xf]
      %v1483 = vld [vmem:[%s7 + $0x8] sm:$0xf]
      %v1484 = vld [vmem:[%s7 + $0xc] sm:$0xf]
      %v1485 = vld [vmem:[%s2 + $0x12] sm:$0x1]
      %v1486 = vlaneseq
      %v1487 = vshrl.u32 %v1486, 7
      %v1488 = vsub.s32 0, %v1487
      %v1489 = vrot.slane %v1485, %v1488
      %v1494 = vunpack.c.l.b16 %v1481
      %v1495 = vunpack.c.l.b16 %v1482
      %v1496 = vunpack.c.l.b16 %v1483
      %v1497 = vunpack.c.l.b16 %v1484
      %v1498 = vpack.c.b16 %v1495, %v1494
      %v1499 = vpack.c.b16 %v1497, %v1496
      %v1503 = vsel %vm319, %v1480, 0
      %1505 = vmatprep.subr.bf16.mxu0 0
      %1506 = vmatpush1.bf16.msra.mxu0 %v1498
      %1507 = vmatprep.subr.bf16.mxu0 0
      %1508 = vmatpush1.bf16.msra.mxu0 %v1499
      %1509 = vmatprep.subr.bf16.mxu0 0
      %1510 = vmatpush1.bf16.msra.mxu0 0
      %1511 = vmatprep.subr.bf16.mxu0 0
      %1512 = vmatpush1.bf16.msra.mxu0 0
      %1513 = vmatprep.subr.bf16.mxu0 0
      %1514 = vmatpush1.bf16.msra.mxu0 0
      %1515 = vmatprep.subr.bf16.mxu0 0
      %1516 = vmatpush1.bf16.msra.mxu0 0
      %1517 = vmatprep.subr.bf16.mxu0 0
      %1518 = vmatpush1.bf16.msra.mxu0 0
      %1519 = vmatprep.subr.bf16.mxu0 0
      %1520 = vmatpush1.bf16.msra.mxu0 0
      %1521 = vmatprep.subr.bf16.mxu0 0
      %1522 = vmatpush1.bf16.msra.mxu0 0
      %1523 = vmatprep.subr.bf16.mxu0 0
      %1524 = vmatpush1.bf16.msra.mxu0 0
      %1525 = vmatprep.subr.bf16.mxu0 0
      %1526 = vmatpush1.bf16.msra.mxu0 0
      %1527 = vmatprep.subr.bf16.mxu0 0
      %1528 = vmatpush1.bf16.msra.mxu0 0
      %1529 = vmatprep.subr.bf16.mxu0 0
      %1530 = vmatpush1.bf16.msra.mxu0 0
      %1531 = vmatprep.subr.bf16.mxu0 0
      %1532 = vmatpush1.bf16.msra.mxu0 0
      %1533 = vmatprep.subr.bf16.mxu0 0
      %1534 = vmatpush1.bf16.msra.mxu0 0
      %1535 = vmatprep.subr.bf16.mxu0 0
      %1536 = vmatpush1.bf16.msra.mxu0 0
      %1537 = vmatprep.mubr.bf16.mxu0 0
      %1538 = vmatmul.mubr.bf16.gmra.mrb[0].mxu0 %v1503
      %v1539 = vpop.f32.mrb[0].mxu0
      %v1540 = vadd.f32 %v1489, %v1539
      %v1541 = vpop.f32.mrb[0].mxu0
      %v1542 = vpop.f32.mrb[0].mxu0
      %v1543 = vpop.f32.mrb[0].mxu0
      %1544 = vdwg.mxu0
      %1545 = vmax.xlane.f32.xlu0 %v1540
      %v1546 = vpop.xlane.xlu0 %1545
      %v1547 = vsub.f32 %v1540, %v1546
      %v1548 = vmul.f32 %v1547, 1.442695
      %v1549 = vpow.pop %v1548
      %1550 = vadd.xlane.f32.xlu0 %v1549
      %v1551 = vpop.xlane.xlu0 %1550
      %v1552 = vrcp.pop %v1551
      %v1553 = vmul.f32 %v1549, %v1552
      %1554 = vst [vmem:[%s314] sm:$0xff] %v1553
      %p1555 = scmp.lt.s32.totalorder %s19, 1
      %s1556 = scalar_select %p1555, %s19, 1
      %s1557 = smul.addr %s1556, 8
      %s1558 = scalar_lea.vmem %s8, %s1557
      // Predicated region
      $region53: #{forward.1} parent=51 // pred_check
        %p1559 = pneg %p215
      $region54: #{forward.1} parent=51 // pred_check_branch
        %1561 = sbr.rel (%p1559) target = $region56
      $region55: #{forward.1} parent=51 // pred_region
        _
      $region56: #{forward.1} parent=51 // pred_fallthru
        _
    $region52: #{forward.1} parent=5 // pred_fallthru
      _
    %p1562 = scmp.le.s32.totalorder 2, %s14
    // Predicated region
    $region57: #{forward.1} parent=5 // pred_check
      %p1563 = pneg %p1562
    $region58: #{forward.1} parent=5 // pred_check_branch
      %1565 = sbr.rel (%p1563) target = $region60
    $region59: #{forward.1} parent=5 // pred_region
      %s1566 = ssub.s32 %s14, 2
      // Predicated region
      $region61: #{forward.1} parent=59 // pred_check
        %p1567 = pneg %p221
      $region62: #{forward.1} parent=59 // pred_check_branch
        %1569 = sbr.rel (%p1567) target = $region64
      $region63: #{forward.1} parent=59 // pred_region
        %p1570 = scmp.lt.s32.totalorder %s20, 1
        %s1571 = scalar_select %p1570, %s20, 1
        %s1572 = smul.addr %s1571, 8
        %s1573 = scalar_lea.vmem %s8, %s1572
      $region64: #{forward.1} parent=59 // pred_fallthru
        _
    $region60: #{forward.1} parent=5 // pred_fallthru
      _
  $region6: #{forward.1} parent=0 // loop_footer
    %s18 = sadd.s32 1, %s14
  $region7: #{forward.1} parent=0 // loop_footer_branch
    %13 = sbr.rel target = $region3
  $region8: #{forward.1} parent=0 // loop_exit
    _

</llo_original>
